<compile_context>
chip_gen: v6e
topology: v6e:2x2x1
jax: 0.10.0
libtpu: 0.0.40
codegen_flags: <defaults>
</compile_context>

<pallas_src>
import functools

import jax
import jax.numpy as jnp
from jax.experimental import pallas as pl
from jax.experimental.pallas import tpu as pltpu


VMEM_LIMIT = 32 * 1024 * 1024  # explicit scoped-VMEM cap: safe on v5e/v6e/v7x


# -----------------------------------------------------------------------------
# Tiling helper: largest aligned tile that divides `dim`, else full dim.
# -----------------------------------------------------------------------------

def _pick_tile(dim, target, align):
    if dim <= target:
        return dim
    t = (min(target, dim) // align) * align
    while t >= align:
        if dim % t == 0:
            return t
        t -= align
    return dim  # no aligned divisor <= target exists; use the full dim


# -----------------------------------------------------------------------------
# Tiled linear (optionally + GELU), bf16 in / bf16 out, f32 accumulation
# -----------------------------------------------------------------------------

def _linear_kernel(x_ref, w_ref, b_ref, o_ref, acc_ref, *, activation):
    @pl.when(pl.program_id(2) == 0)
    def _():
        acc_ref[...] = jnp.zeros_like(acc_ref)

    acc_ref[...] += jnp.dot(x_ref[...], w_ref[...],
                            preferred_element_type=jnp.float32)

    @pl.when(pl.program_id(2) == pl.num_programs(2) - 1)
    def _():
        y = acc_ref[...] + b_ref[...]
        if activation == "gelu":
            # TODO(synk): HF BERT uses exact erf-GELU; tanh approximation used
            # here for robust Mosaic lowering (EUP tanh).
            y = jax.nn.gelu(y, approximate=True)
        o_ref[...] = y.astype(o_ref.dtype)


def linear(x, w, b, activation=None, *, tm=256, tn=512, tk=512):
    """x:(M,K) bf16 @ w:(K,N) bf16 + b:(N,) f32 -> (M,N) bf16 (f32 accum)."""
    M, K = x.shape
    N = w.shape[1]
    tm = _pick_tile(M, tm, 8)
    tn = _pick_tile(N, tn, 128)
    tk = _pick_tile(K, tk, 128)
    return pl.pallas_call(
        functools.partial(_linear_kernel, activation=activation),
        out_shape=jax.ShapeDtypeStruct((M, N), jnp.bfloat16),
        grid=(M // tm, N // tn, K // tk),
        in_specs=[pl.BlockSpec((tm, tk), lambda i, j, k: (i, k)),
                  pl.BlockSpec((tk, tn), lambda i, j, k: (k, j)),
                  pl.BlockSpec((1, tn), lambda i, j, k: (0, j))],
        out_specs=pl.BlockSpec((tm, tn), lambda i, j, k: (i, j)),
        scratch_shapes=[pltpu.VMEM((tm, tn), jnp.float32)],
        compiler_params=pltpu.CompilerParams(
            dimension_semantics=("parallel", "parallel", "arbitrary"),
            vmem_limit_bytes=VMEM_LIMIT),
    )(x, w, b.reshape(1, N))


# -----------------------------------------------------------------------------
# Fused linear + bias + residual add + LayerNorm (N kept un-tiled for the LN
# row reduction); bf16 in / bf16 out, f32 math.
# -----------------------------------------------------------------------------

def _linear_residual_ln_kernel(x_ref, w_ref, b_ref, r_ref, g_ref, bt_ref,
                               o_ref, acc_ref):
    @pl.when(pl.program_id(1) == 0)
    def _():
        acc_ref[...] = jnp.zeros_like(acc_ref)

    acc_ref[...] += jnp.dot(x_ref[...], w_ref[...],
                            preferred_element_type=jnp.float32)

    @pl.when(pl.program_id(1) == pl.num_programs(1) - 1)
    def _():
        y = acc_ref[...] + b_ref[...] + r_ref[...].astype(jnp.float32)
        mu = jnp.mean(y, axis=-1, keepdims=True)
        var = jnp.mean(jnp.square(y - mu), axis=-1, keepdims=True)
        o_ref[...] = ((y - mu) * jax.lax.rsqrt(var + 1e-12) * g_ref[...]
                      + bt_ref[...]).astype(o_ref.dtype)


def linear_residual_ln(x, w, b, residual, gamma, beta, *, tm=256, tk=512):
    M, K = x.shape
    N = w.shape[1]
    tm = _pick_tile(M, tm, 8)
    tk = _pick_tile(K, tk, 128)
    return pl.pallas_call(
        _linear_residual_ln_kernel,
        out_shape=jax.ShapeDtypeStruct((M, N), jnp.bfloat16),
        grid=(M // tm, K // tk),
        in_specs=[pl.BlockSpec((tm, tk), lambda i, k: (i, k)),
                  pl.BlockSpec((tk, N), lambda i, k: (k, 0)),
                  pl.BlockSpec((1, N), lambda i, k: (0, 0)),
                  pl.BlockSpec((tm, N), lambda i, k: (i, 0)),
                  pl.BlockSpec((1, N), lambda i, k: (0, 0)),
                  pl.BlockSpec((1, N), lambda i, k: (0, 0))],
        out_specs=pl.BlockSpec((tm, N), lambda i, k: (i, 0)),
        scratch_shapes=[pltpu.VMEM((tm, N), jnp.float32)],
        compiler_params=pltpu.CompilerParams(
            dimension_semantics=("parallel", "arbitrary"),
            vmem_limit_bytes=VMEM_LIMIT),
    )(x, w, b.reshape(1, N), residual, gamma.reshape(1, N), beta.reshape(1, N))


# -----------------------------------------------------------------------------
# Embedding LayerNorm (f32 in -> bf16 out)
# -----------------------------------------------------------------------------

def _layernorm_kernel(x_ref, g_ref, b_ref, o_ref):
    x = x_ref[...]
    mu = jnp.mean(x, axis=-1, keepdims=True)
    var = jnp.mean(jnp.square(x - mu), axis=-1, keepdims=True)
    o_ref[...] = ((x - mu) * jax.lax.rsqrt(var + 1e-12) * g_ref[...]
                  + b_ref[...]).astype(o_ref.dtype)


def layer_norm(x, gamma, beta, *, tm=256):
    M, H = x.shape
    tm = _pick_tile(M, tm, 8)
    return pl.pallas_call(
        _layernorm_kernel,
        out_shape=jax.ShapeDtypeStruct((M, H), jnp.bfloat16),
        grid=(M // tm,),
        in_specs=[pl.BlockSpec((tm, H), lambda i: (i, 0)),
                  pl.BlockSpec((1, H), lambda i: (0, 0)),
                  pl.BlockSpec((1, H), lambda i: (0, 0))],
        out_specs=pl.BlockSpec((tm, H), lambda i: (i, 0)),
        compiler_params=pltpu.CompilerParams(dimension_semantics=("parallel",)),
    )(x, gamma.reshape(1, H), beta.reshape(1, H))


# -----------------------------------------------------------------------------
# Fused QKV projection + multi-head attention.
# One grid step per batch row; each head's context is stored directly into its
# output column slice (no concatenate, no (B*S,3H) HBM round trip).
# -----------------------------------------------------------------------------

def _attention_kernel(x_ref, wqkv_ref, bqkv_ref, m_ref, o_ref, *,
                      heads, head_dim, hidden, scale):
    # Fused QKV projection (bf16 MXU, f32 accumulate), result kept in VMEM.
    qkv = (jnp.dot(x_ref[...], wqkv_ref[...],
                   preferred_element_type=jnp.float32)
           + bqkv_ref[...]).astype(jnp.bfloat16)            # (S, 3H)
    mask = m_ref[0]                                          # (1, S) additive

    for h in range(heads):  # per-head temps die as soon as the slice is stored
        q = qkv[:, h * head_dim:(h + 1) * head_dim]
        k = qkv[:, hidden + h * head_dim: hidden + (h + 1) * head_dim]
        v = qkv[:, 2 * hidden + h * head_dim: 2 * hidden + (h + 1) * head_dim]
        s = jax.lax.dot_general(q, k, (((1,), (1,)), ((), ())),
                                preferred_element_type=jnp.float32) * scale
        s = s + mask
        s = s - jnp.max(s, axis=-1, keepdims=True)
        p = jnp.exp(s)
        p = p * pl.reciprocal(jnp.sum(p, axis=-1, keepdims=True), approx=True)
        ctx = jnp.dot(p.astype(jnp.bfloat16), v,
                      preferred_element_type=jnp.float32)
        o_ref[:, h * head_dim:(h + 1) * head_dim] = ctx.astype(o_ref.dtype)


def attention_fused_qkv(x, wqkv, bqkv, add_mask, batch, seq, hidden, heads,
                        scale):
    """x:(B*S,H) bf16, wqkv:(H,3H) bf16, add_mask:(B,1,S) f32 -> (B*S,H) bf16."""
    head_dim = hidden // heads
    return pl.pallas_call(
        functools.partial(_attention_kernel, heads=heads, head_dim=head_dim,
                          hidden=hidden, scale=scale),
        out_shape=jax.ShapeDtypeStruct((batch * seq, hidden), jnp.bfloat16),
        grid=(batch,),
        in_specs=[pl.BlockSpec((seq, hidden), lambda b: (b, 0)),
                  pl.BlockSpec((hidden, 3 * hidden), lambda b: (0, 0)),
                  pl.BlockSpec((1, 3 * hidden), lambda b: (0, 0)),
                  pl.BlockSpec((1, 1, seq), lambda b: (b, 0, 0))],
        out_specs=pl.BlockSpec((seq, hidden), lambda b: (b, 0)),
        compiler_params=pltpu.CompilerParams(
            dimension_semantics=("parallel",),
            vmem_limit_bytes=VMEM_LIMIT),
    )(x, wqkv, bqkv.reshape(1, 3 * hidden), add_mask)


# -----------------------------------------------------------------------------
# Fused pooler (tanh) + classifier head
# -----------------------------------------------------------------------------

def _pooler_head_kernel(cls_ref, wp_ref, bp_ref, wc_ref, bc_ref, o_ref):
    pooled = jnp.tanh(
        jnp.dot(cls_ref[...], wp_ref[...],
                preferred_element_type=jnp.float32) + bp_ref[...])
    # Dropout(p=0.2) is identity at inference.
    logits = jnp.dot(pooled.astype(jnp.bfloat16), wc_ref[...],
                     preferred_element_type=jnp.float32) + bc_ref[...]
    o_ref[...] = logits.astype(o_ref.dtype)


def pooler_head(cls_tok, wp, bp, wc, bc):
    # TODO(synk): single grid step (negligible cost); only one v7x TC used here.
    B, H = cls_tok.shape
    C = wc.shape[1]
    return pl.pallas_call(
        _pooler_head_kernel,
        out_shape=jax.ShapeDtypeStruct((B, C), jnp.float32),
        in_specs=[pl.BlockSpec((B, H), lambda: (0, 0)),
                  pl.BlockSpec((H, H), lambda: (0, 0)),
                  pl.BlockSpec((1, H), lambda: (0, 0)),
                  pl.BlockSpec((H, C), lambda: (0, 0)),
                  pl.BlockSpec((1, C), lambda: (0, 0))],
        out_specs=pl.BlockSpec((B, C), lambda: (0, 0)),
    )(cls_tok, wp, bp.reshape(1, H), wc, bc.reshape(1, C))


# -----------------------------------------------------------------------------
# Parameter init (deterministic, synthetic small-BERT config)
# -----------------------------------------------------------------------------

CFG = dict(vocab=50, max_pos=16, type_vocab=2, hidden=32, heads=2,
           intermediate=64, layers=2, num_classes=1)


def init_params(key, cfg):
    H, I = cfg["hidden"], cfg["intermediate"]

    def dense(k, shape):   # MXU weights stored bf16 (halves weight DMA bytes)
        return (0.02 * jax.random.normal(k, shape, dtype=jnp.float32)
                ).astype(jnp.bfloat16)

    keys = iter(jax.random.split(key, 64))
    p = {
        "word_emb": 0.02 * jax.random.normal(next(keys), (cfg["vocab"], H), jnp.float32),
        "pos_emb": 0.02 * jax.random.normal(next(keys), (cfg["max_pos"], H), jnp.float32),
        "type_emb": 0.02 * jax.random.normal(next(keys), (cfg["type_vocab"], H), jnp.float32),
        "emb_ln_g": jnp.ones((H,), jnp.float32),
        "emb_ln_b": jnp.zeros((H,), jnp.float32),
        "layers": [],
        "wp": dense(next(keys), (H, H)), "bp": jnp.zeros((H,), jnp.float32),
        "wc": dense(next(keys), (H, cfg["num_classes"])),
        "bc": jnp.zeros((cfg["num_classes"],), jnp.float32),
    }
    for _ in range(cfg["layers"]):
        p["layers"].append({
            # fused QKV weight: columns = [Wq | Wk | Wv]
            "wqkv": dense(next(keys), (H, 3 * H)),
            "bqkv": jnp.zeros((3 * H,), jnp.float32),
            "wo": dense(next(keys), (H, H)), "bo": jnp.zeros((H,), jnp.float32),
            "ln1_g": jnp.ones((H,), jnp.float32), "ln1_b": jnp.zeros((H,), jnp.float32),
            "w1": dense(next(keys), (H, I)), "b1": jnp.zeros((I,), jnp.float32),
            "w2": dense(next(keys), (I, H)), "b2": jnp.zeros((H,), jnp.float32),
            "ln2_g": jnp.ones((H,), jnp.float32), "ln2_b": jnp.zeros((H,), jnp.float32),
        })
    return p


# -----------------------------------------------------------------------------
# Forward pass
# -----------------------------------------------------------------------------

def bert_classifier_forward(params, input_ids, attention_mask, cfg=CFG):
    B, S = input_ids.shape
    H, Hn = cfg["hidden"], cfg["heads"]
    Dh = H // Hn

    # --- embeddings (gather is JAX glue; LayerNorm is a Pallas kernel) ---
    # TODO(synk): token_type_ids hard-coded to 0 (matches the demo usage).
    we = params["word_emb"][input_ids]                         # (B, S, H)
    pe = params["pos_emb"][:S][None, :, :]                     # (1, S, H)
    te = params["type_emb"][0][None, None, :]
    x = (we + pe + te).reshape(B * S, H).astype(jnp.float32)
    x = layer_norm(x, params["emb_ln_g"], params["emb_ln_b"])  # (B*S, H) bf16
    # (embedding dropout is identity at inference)

    # HF-style additive mask: 0 where attended, -10000 where masked.
    add_mask = ((1.0 - attention_mask.astype(jnp.float32)) * -10000.0)[:, None, :]

    scale = 1.0 / (Dh ** 0.5)
    for lyr in params["layers"]:
        ctx = attention_fused_qkv(x, lyr["wqkv"], lyr["bqkv"], add_mask,
                                  B, S, H, Hn, scale)                     # bf16
        x = linear_residual_ln(ctx, lyr["wo"], lyr["bo"],
                               residual=x, gamma=lyr["ln1_g"], beta=lyr["ln1_b"])
        ff = linear(x, lyr["w1"], lyr["b1"], activation="gelu")           # bf16
        x = linear_residual_ln(ff, lyr["w2"], lyr["b2"],
                               residual=x, gamma=lyr["ln2_g"], beta=lyr["ln2_b"])

    # --- pooler: tanh(W_p h[:, 0] + b_p)  +  Dropout(0.2) -> Linear head ---
    # TODO(synk): training-mode dropout (p=0.2) not implemented; identity at inference.
    cls = x.reshape(B, S, H)[:, 0, :]                                     # (B, H)
    logits = pooler_head(cls, params["wp"], params["bp"],
                         params["wc"], params["bc"])                      # (B, C)
    return logits


# -----------------------------------------------------------------------------
# Demo
# -----------------------------------------------------------------------------

if __name__ == "__main__":
    key = jax.random.PRNGKey(0)
    k_param, k_ids = jax.random.split(key)

    B, S = 2, 8
    params = init_params(k_param, CFG)
    input_ids = jax.random.randint(k_ids, (B, S), 0, CFG["vocab"], dtype=jnp.int32)
    attention_mask = jnp.array([[1, 1, 1, 1, 1, 1, 0, 0],
                                [1, 1, 1, 1, 0, 0, 0, 0]], dtype=jnp.int32)

    fwd = jax.jit(bert_classifier_forward)
    logits = fwd(params, input_ids, attention_mask)
    jax.block_until_ready(logits)
    assert logits.shape == (B, CFG["num_classes"])
    print("KERNEL_OK")
</pallas_src>

<mosaic_0001>
module attributes {stable_mosaic.version = 11 : i64} {
  func.func @_layernorm_kernel(%arg0: i32, %arg1: memref<16x32xf32, #tpu.memory_space<vmem>>, %arg2: memref<1x32xf32, #tpu.memory_space<vmem>>, %arg3: memref<1x32xf32, #tpu.memory_space<vmem>>, %arg4: memref<16x32xbf16, #tpu.memory_space<vmem>>) attributes {dimension_semantics = [#tpu.dimension_semantics<parallel>], iteration_bounds = array<i64: 1>, scalar_prefetch = 0 : i64, scratch_operands = 0 : i64, tpu.core_type = #tpu.core_type<tc>, window_params = [{transform_indices = @transform_0, window_bounds = array<i64: 16, 32>}, {pipeline_mode = #tpu.pipeline_mode<synchronous>, transform_indices = @transform_1, window_bounds = array<i64: 1, 32>}, {pipeline_mode = #tpu.pipeline_mode<synchronous>, transform_indices = @transform_2, window_bounds = array<i64: 1, 32>}, {transform_indices = @transform_3, window_bounds = array<i64: 16, 32>}]} {
    %c0 = arith.constant 0 : index
    %c0_0 = arith.constant 0 : index
    %0 = vector.load %arg1[%c0, %c0_0] : memref<16x32xf32, #tpu.memory_space<vmem>>, vector<16x32xf32>
    %cst = arith.constant dense<0.000000e+00> : vector<16xf32>
    %1 = vector.multi_reduction <add>, %0, %cst [1] : vector<16x32xf32> to vector<16xf32>
    %2 = vector.shape_cast %1 : vector<16xf32> to vector<16x1xf32>
    %cst_1 = arith.constant 3.200000e+01 : f32
    %3 = vector.broadcast %cst_1 : f32 to vector<16x1xf32>
    %4 = arith.divf %2, %3 : vector<16x1xf32>
    %5 = vector.broadcast %4 : vector<16x1xf32> to vector<16x32xf32>
    %6 = arith.subf %0, %5 : vector<16x32xf32>
    %7 = arith.mulf %6, %6 : vector<16x32xf32>
    %cst_2 = arith.constant dense<0.000000e+00> : vector<16xf32>
    %8 = vector.multi_reduction <add>, %7, %cst_2 [1] : vector<16x32xf32> to vector<16xf32>
    %9 = vector.shape_cast %8 : vector<16xf32> to vector<16x1xf32>
    %cst_3 = arith.constant 3.200000e+01 : f32
    %10 = vector.broadcast %cst_3 : f32 to vector<16x1xf32>
    %11 = arith.divf %9, %10 : vector<16x1xf32>
    %12 = vector.broadcast %4 : vector<16x1xf32> to vector<16x32xf32>
    %13 = arith.subf %0, %12 : vector<16x32xf32>
    %cst_4 = arith.constant 9.99999996E-13 : f32
    %14 = vector.broadcast %cst_4 : f32 to vector<16x1xf32>
    %15 = arith.addf %11, %14 : vector<16x1xf32>
    %16 = math.rsqrt %15 : vector<16x1xf32>
    %17 = vector.broadcast %16 : vector<16x1xf32> to vector<16x32xf32>
    %18 = arith.mulf %13, %17 : vector<16x32xf32>
    %c0_5 = arith.constant 0 : index
    %c0_6 = arith.constant 0 : index
    %19 = vector.load %arg2[%c0_5, %c0_6] : memref<1x32xf32, #tpu.memory_space<vmem>>, vector<1x32xf32>
    %20 = vector.broadcast %19 : vector<1x32xf32> to vector<16x32xf32>
    %21 = arith.mulf %18, %20 : vector<16x32xf32>
    %c0_7 = arith.constant 0 : index
    %c0_8 = arith.constant 0 : index
    %22 = vector.load %arg3[%c0_7, %c0_8] : memref<1x32xf32, #tpu.memory_space<vmem>>, vector<1x32xf32>
    %23 = vector.broadcast %22 : vector<1x32xf32> to vector<16x32xf32>
    %24 = arith.addf %21, %23 : vector<16x32xf32>
    %25 = arith.truncf %24 : vector<16x32xf32> to vector<16x32xbf16>
    %c0_9 = arith.constant 0 : index
    %c0_10 = arith.constant 0 : index
    %26 = vector.load %arg4[%c0_9, %c0_10] : memref<16x32xbf16, #tpu.memory_space<vmem>>, vector<16x32xbf16>
    tpu.vector_store %arg4[%c0_9, %c0_10], %25 {strides = array<i32>} : memref<16x32xbf16, #tpu.memory_space<vmem>>, vector<16x32xbf16>,
    return
  }
  func.func @transform_0(%arg0: i32) -> (i32, i32) {
    %c0_i32 = arith.constant 0 : i32
    %c0_i32_0 = arith.constant 0 : i32
    return %arg0, %c0_i32 : i32, i32
  }
  func.func @transform_1(%arg0: i32) -> (i32, i32) {
    %c0_i32 = arith.constant 0 : i32
    %c0_i32_0 = arith.constant 0 : i32
    %c0_i32_1 = arith.constant 0 : i32
    return %c0_i32, %c0_i32_0 : i32, i32
  }
  func.func @transform_2(%arg0: i32) -> (i32, i32) {
    %c0_i32 = arith.constant 0 : i32
    %c0_i32_0 = arith.constant 0 : i32
    %c0_i32_1 = arith.constant 0 : i32
    return %c0_i32, %c0_i32_0 : i32, i32
  }
  func.func @transform_3(%arg0: i32) -> (i32, i32) {
    %c0_i32 = arith.constant 0 : i32
    %c0_i32_0 = arith.constant 0 : i32
    return %arg0, %c0_i32 : i32, i32
  }
}

module attributes {stable_mosaic.version = 11 : i64} {
  func.func @_attention_kernel(%arg0: i32, %arg1: memref<8x32xbf16, #tpu.memory_space<vmem>>, %arg2: memref<32x96xbf16, #tpu.memory_space<vmem>>, %arg3: memref<1x96xf32, #tpu.memory_space<vmem>>, %arg4: memref<1x1x8xf32, #tpu.memory_space<vmem>>, %arg5: memref<8x32xbf16, #tpu.memory_space<vmem>>) attributes {dimension_semantics = [#tpu.dimension_semantics<parallel>], iteration_bounds = array<i64: 2>, scalar_prefetch = 0 : i64, scratch_operands = 0 : i64, tpu.core_type = #tpu.core_type<tc>, window_params = [{transform_indices = @transform_0, window_bounds = array<i64: 8, 32>}, {pipeline_mode = #tpu.pipeline_mode<synchronous>, transform_indices = @transform_1, window_bounds = array<i64: 32, 96>}, {pipeline_mode = #tpu.pipeline_mode<synchronous>, transform_indices = @transform_2, window_bounds = array<i64: 1, 96>}, {transform_indices = @transform_3, window_bounds = array<i64: 1, 1, 8>}, {transform_indices = @transform_4, window_bounds = array<i64: 8, 32>}]} {
    %c0 = arith.constant 0 : index
    %c0_0 = arith.constant 0 : index
    %0 = vector.load %arg1[%c0, %c0_0] : memref<8x32xbf16, #tpu.memory_space<vmem>>, vector<8x32xbf16>
    %c0_1 = arith.constant 0 : index
    %c0_2 = arith.constant 0 : index
    %1 = vector.load %arg2[%c0_1, %c0_2] : memref<32x96xbf16, #tpu.memory_space<vmem>>, vector<32x96xbf16>
    %cst = arith.constant dense<0.000000e+00> : vector<8x96xf32>
    %2 = tpu.matmul %0, %1, %cst {dimension_numbers = #tpu.dot_dimension_numbers<[1], [0], [0], [1], [0, 0, 1, 1], [], []>} : vector<8x32xbf16>, vector<32x96xbf16>, vector<8x96xf32> -> vector<8x96xf32>
    %c0_3 = arith.constant 0 : index
    %c0_4 = arith.constant 0 : index
    %3 = vector.load %arg3[%c0_3, %c0_4] : memref<1x96xf32, #tpu.memory_space<vmem>>, vector<1x96xf32>
    %4 = vector.broadcast %3 : vector<1x96xf32> to vector<8x96xf32>
    %5 = arith.addf %2, %4 : vector<8x96xf32>
    %6 = arith.truncf %5 : vector<8x96xf32> to vector<8x96xbf16>
    %c0_5 = arith.constant 0 : index
    %c0_6 = arith.constant 0 : index
    %c0_7 = arith.constant 0 : index
    %7 = vector.load %arg4[%c0_5, %c0_6, %c0_7] : memref<1x1x8xf32, #tpu.memory_space<vmem>>, vector<1x1x8xf32>
    %8 = vector.shape_cast %7 : vector<1x1x8xf32> to vector<1x8xf32>
    %9 = vector.extract_strided_slice %6 {offsets = [0, 0], sizes = [8, 16], strides = [1, 1]} : vector<8x96xbf16> to vector<8x16xbf16>
    %10 = vector.extract_strided_slice %6 {offsets = [0, 32], sizes = [8, 16], strides = [1, 1]} : vector<8x96xbf16> to vector<8x16xbf16>
    %11 = vector.extract_strided_slice %6 {offsets = [0, 64], sizes = [8, 16], strides = [1, 1]} : vector<8x96xbf16> to vector<8x16xbf16>
    %cst_8 = arith.constant dense<0.000000e+00> : vector<8x8xf32>
    %12 = tpu.matmul %9, %10, %cst_8 {dimension_numbers = #tpu.dot_dimension_numbers<[1], [1], [0], [0], [0, 0, 1, 0], [], []>} : vector<8x16xbf16>, vector<8x16xbf16>, vector<8x8xf32> -> vector<8x8xf32>
    %cst_9 = arith.constant 2.500000e-01 : f32
    %13 = vector.broadcast %cst_9 : f32 to vector<8x8xf32>
    %14 = arith.mulf %12, %13 : vector<8x8xf32>
    %15 = vector.broadcast %8 : vector<1x8xf32> to vector<8x8xf32>
    %16 = arith.addf %14, %15 : vector<8x8xf32>
    %cst_10 = arith.constant dense<0xFF800000> : vector<8xf32>
    %17 = vector.multi_reduction <maximumf>, %16, %cst_10 [1] : vector<8x8xf32> to vector<8xf32>
    %18 = vector.shape_cast %17 : vector<8xf32> to vector<8x1xf32>
    %19 = vector.broadcast %18 : vector<8x1xf32> to vector<8x8xf32>
    %20 = arith.subf %16, %19 : vector<8x8xf32>
    %21 = math.exp %20 : vector<8x8xf32>
    %cst_11 = arith.constant dense<0.000000e+00> : vector<8xf32>
    %22 = vector.multi_reduction <add>, %21, %cst_11 [1] : vector<8x8xf32> to vector<8xf32>
    %23 = vector.shape_cast %22 : vector<8xf32> to vector<8x1xf32>
    %24 = tpu.reciprocal %23 {approx = true} : vector<8x1xf32> -> vector<8x1xf32>
    %25 = vector.broadcast %24 : vector<8x1xf32> to vector<8x8xf32>
    %26 = arith.mulf %21, %25 : vector<8x8xf32>
    %27 = arith.truncf %26 : vector<8x8xf32> to vector<8x8xbf16>
    %cst_12 = arith.constant dense<0.000000e+00> : vector<8x16xf32>
    %28 = tpu.matmul %27, %11, %cst_12 {dimension_numbers = #tpu.dot_dimension_numbers<[1], [0], [0], [1], [0, 0, 1, 1], [], []>} : vector<8x8xbf16>, vector<8x16xbf16>, vector<8x16xf32> -> vector<8x16xf32>
    %29 = arith.truncf %28 : vector<8x16xf32> to vector<8x16xbf16>
    %c0_13 = arith.constant 0 : index
    %c0_14 = arith.constant 0 : index
    %30 = vector.load %arg5[%c0_13, %c0_14] : memref<8x32xbf16, #tpu.memory_space<vmem>>, vector<8x16xbf16>
    tpu.vector_store %arg5[%c0_13, %c0_14], %29 {strides = array<i32>} : memref<8x32xbf16, #tpu.memory_space<vmem>>, vector<8x16xbf16>,
    %31 = vector.extract_strided_slice %6 {offsets = [0, 16], sizes = [8, 16], strides = [1, 1]} : vector<8x96xbf16> to vector<8x16xbf16>
    %32 = vector.extract_strided_slice %6 {offsets = [0, 48], sizes = [8, 16], strides = [1, 1]} : vector<8x96xbf16> to vector<8x16xbf16>
    %33 = vector.extract_strided_slice %6 {offsets = [0, 80], sizes = [8, 16], strides = [1, 1]} : vector<8x96xbf16> to vector<8x16xbf16>
    %cst_15 = arith.constant dense<0.000000e+00> : vector<8x8xf32>
    %34 = tpu.matmul %31, %32, %cst_15 {dimension_numbers = #tpu.dot_dimension_numbers<[1], [1], [0], [0], [0, 0, 1, 0], [], []>} : vector<8x16xbf16>, vector<8x16xbf16>, vector<8x8xf32> -> vector<8x8xf32>
    %cst_16 = arith.constant 2.500000e-01 : f32
    %35 = vector.broadcast %cst_16 : f32 to vector<8x8xf32>
    %36 = arith.mulf %34, %35 : vector<8x8xf32>
    %37 = vector.broadcast %8 : vector<1x8xf32> to vector<8x8xf32>
    %38 = arith.addf %36, %37 : vector<8x8xf32>
    %cst_17 = arith.constant dense<0xFF800000> : vector<8xf32>
    %39 = vector.multi_reduction <maximumf>, %38, %cst_17 [1] : vector<8x8xf32> to vector<8xf32>
    %40 = vector.shape_cast %39 : vector<8xf32> to vector<8x1xf32>
    %41 = vector.broadcast %40 : vector<8x1xf32> to vector<8x8xf32>
    %42 = arith.subf %38, %41 : vector<8x8xf32>
    %43 = math.exp %42 : vector<8x8xf32>
    %cst_18 = arith.constant dense<0.000000e+00> : vector<8xf32>
    %44 = vector.multi_reduction <add>, %43, %cst_18 [1] : vector<8x8xf32> to vector<8xf32>
    %45 = vector.shape_cast %44 : vector<8xf32> to vector<8x1xf32>
    %46 = tpu.reciprocal %45 {approx = true} : vector<8x1xf32> -> vector<8x1xf32>
    %47 = vector.broadcast %46 : vector<8x1xf32> to vector<8x8xf32>
    %48 = arith.mulf %43, %47 : vector<8x8xf32>
    %49 = arith.truncf %48 : vector<8x8xf32> to vector<8x8xbf16>
    %cst_19 = arith.constant dense<0.000000e+00> : vector<8x16xf32>
    %50 = tpu.matmul %49, %33, %cst_19 {dimension_numbers = #tpu.dot_dimension_numbers<[1], [0], [0], [1], [0, 0, 1, 1], [], []>} : vector<8x8xbf16>, vector<8x16xbf16>, vector<8x16xf32> -> vector<8x16xf32>
    %51 = arith.truncf %50 : vector<8x16xf32> to vector<8x16xbf16>
    %c0_20 = arith.constant 0 : index
    %c16 = arith.constant 16 : index
    %52 = vector.load %arg5[%c0_20, %c16] : memref<8x32xbf16, #tpu.memory_space<vmem>>, vector<8x16xbf16>
    tpu.vector_store %arg5[%c0_20, %c16], %51 {strides = array<i32>} : memref<8x32xbf16, #tpu.memory_space<vmem>>, vector<8x16xbf16>,
    return
  }
  func.func @transform_0(%arg0: i32) -> (i32, i32) {
    %c0_i32 = arith.constant 0 : i32
    %c0_i32_0 = arith.constant 0 : i32
    return %arg0, %c0_i32 : i32, i32
  }
  func.func @transform_1(%arg0: i32) -> (i32, i32) {
    %c0_i32 = arith.constant 0 : i32
    %c0_i32_0 = arith.constant 0 : i32
    %c0_i32_1 = arith.constant 0 : i32
    return %c0_i32, %c0_i32_0 : i32, i32
  }
  func.func @transform_2(%arg0: i32) -> (i32, i32) {
    %c0_i32 = arith.constant 0 : i32
    %c0_i32_0 = arith.constant 0 : i32
    %c0_i32_1 = arith.constant 0 : i32
    return %c0_i32, %c0_i32_0 : i32, i32
  }
  func.func @transform_3(%arg0: i32) -> (i32, i32, i32) {
    %c0_i32 = arith.constant 0 : i32
    %c0_i32_0 = arith.constant 0 : i32
    %c0_i32_1 = arith.constant 0 : i32
    return %arg0, %c0_i32, %c0_i32_0 : i32, i32, i32
  }
  func.func @transform_4(%arg0: i32) -> (i32, i32) {
    %c0_i32 = arith.constant 0 : i32
    %c0_i32_0 = arith.constant 0 : i32
    return %arg0, %c0_i32 : i32, i32
  }
}

module attributes {stable_mosaic.version = 11 : i64} {
  func.func @_linear_residual_ln_kernel(%arg0: i32, %arg1: i32, %arg2: memref<16x32xbf16, #tpu.memory_space<vmem>>, %arg3: memref<32x32xbf16, #tpu.memory_space<vmem>>, %arg4: memref<1x32xf32, #tpu.memory_space<vmem>>, %arg5: memref<16x32xbf16, #tpu.memory_space<vmem>>, %arg6: memref<1x32xf32, #tpu.memory_space<vmem>>, %arg7: memref<1x32xf32, #tpu.memory_space<vmem>>, %arg8: memref<16x32xbf16, #tpu.memory_space<vmem>>, %arg9: memref<16x32xf32, #tpu.memory_space<vmem>>) attributes {dimension_semantics = [#tpu.dimension_semantics<parallel>, #tpu.dimension_semantics<arbitrary>], iteration_bounds = array<i64: 1, 1>, scalar_prefetch = 0 : i64, scratch_operands = 1 : i64, tpu.core_type = #tpu.core_type<tc>, window_params = [{transform_indices = @transform_0, window_bounds = array<i64: 16, 32>}, {transform_indices = @transform_1, window_bounds = array<i64: 32, 32>}, {pipeline_mode = #tpu.pipeline_mode<synchronous>, transform_indices = @transform_2, window_bounds = array<i64: 1, 32>}, {transform_indices = @transform_3, window_bounds = array<i64: 16, 32>}, {pipeline_mode = #tpu.pipeline_mode<synchronous>, transform_indices = @transform_4, window_bounds = array<i64: 1, 32>}, {pipeline_mode = #tpu.pipeline_mode<synchronous>, transform_indices = @transform_5, window_bounds = array<i64: 1, 32>}, {transform_indices = @transform_6, window_bounds = array<i64: 16, 32>}]} {
    %c0_i32 = arith.constant 0 : i32
    %0 = arith.cmpi eq, %arg1, %c0_i32 : i32
    %1 = arith.extui %0 : i1 to i32
    %c0_i32_0 = arith.constant 0 : i32
    %2 = arith.cmpi ne, %1, %c0_i32_0 : i32
    scf.if %2 {
      %cst_10 = arith.constant 0.000000e+00 : f32
      %12 = vector.broadcast %cst_10 : f32 to vector<16x32xf32>
      %c0_11 = arith.constant 0 : index
      %c0_12 = arith.constant 0 : index
      %13 = vector.load %arg9[%c0_11, %c0_12] : memref<16x32xf32, #tpu.memory_space<vmem>>, vector<16x32xf32>
      tpu.vector_store %arg9[%c0_11, %c0_12], %12 {strides = array<i32>} : memref<16x32xf32, #tpu.memory_space<vmem>>, vector<16x32xf32>,
    } else {
    }
    %c0 = arith.constant 0 : index
    %c0_1 = arith.constant 0 : index
    %3 = vector.load %arg9[%c0, %c0_1] : memref<16x32xf32, #tpu.memory_space<vmem>>, vector<16x32xf32>
    %c0_2 = arith.constant 0 : index
    %c0_3 = arith.constant 0 : index
    %4 = vector.load %arg2[%c0_2, %c0_3] : memref<16x32xbf16, #tpu.memory_space<vmem>>, vector<16x32xbf16>
    %c0_4 = arith.constant 0 : index
    %c0_5 = arith.constant 0 : index
    %5 = vector.load %arg3[%c0_4, %c0_5] : memref<32x32xbf16, #tpu.memory_space<vmem>>, vector<32x32xbf16>
    %cst = arith.constant dense<0.000000e+00> : vector<16x32xf32>
    %6 = tpu.matmul %4, %5, %cst {dimension_numbers = #tpu.dot_dimension_numbers<[1], [0], [0], [1], [0, 0, 1, 1], [], []>} : vector<16x32xbf16>, vector<32x32xbf16>, vector<16x32xf32> -> vector<16x32xf32>
    %7 = arith.addf %3, %6 : vector<16x32xf32>
    %c0_6 = arith.constant 0 : index
    %c0_7 = arith.constant 0 : index
    %8 = vector.load %arg9[%c0_6, %c0_7] : memref<16x32xf32, #tpu.memory_space<vmem>>, vector<16x32xf32>
    tpu.vector_store %arg9[%c0_6, %c0_7], %7 {strides = array<i32>} : memref<16x32xf32, #tpu.memory_space<vmem>>, vector<16x32xf32>,
    %c0_i32_8 = arith.constant 0 : i32
    %9 = arith.cmpi eq, %arg1, %c0_i32_8 : i32
    %10 = arith.extui %9 : i1 to i32
    %c0_i32_9 = arith.constant 0 : i32
    %11 = arith.cmpi ne, %10, %c0_i32_9 : i32
    scf.if %11 {
      %c0_10 = arith.constant 0 : index
      %c0_11 = arith.constant 0 : index
      %12 = vector.load %arg9[%c0_10, %c0_11] : memref<16x32xf32, #tpu.memory_space<vmem>>, vector<16x32xf32>
      %c0_12 = arith.constant 0 : index
      %c0_13 = arith.constant 0 : index
      %13 = vector.load %arg4[%c0_12, %c0_13] : memref<1x32xf32, #tpu.memory_space<vmem>>, vector<1x32xf32>
      %14 = vector.broadcast %13 : vector<1x32xf32> to vector<16x32xf32>
      %15 = arith.addf %12, %14 : vector<16x32xf32>
      %c0_14 = arith.constant 0 : index
      %c0_15 = arith.constant 0 : index
      %16 = vector.load %arg5[%c0_14, %c0_15] : memref<16x32xbf16, #tpu.memory_space<vmem>>, vector<16x32xbf16>
      %17 = arith.extf %16 : vector<16x32xbf16> to vector<16x32xf32>
      %18 = arith.addf %15, %17 : vector<16x32xf32>
      %cst_16 = arith.constant dense<0.000000e+00> : vector<16xf32>
      %19 = vector.multi_reduction <add>, %18, %cst_16 [1] : vector<16x32xf32> to vector<16xf32>
      %20 = vector.shape_cast %19 : vector<16xf32> to vector<16x1xf32>
      %cst_17 = arith.constant 3.200000e+01 : f32
      %21 = vector.broadcast %cst_17 : f32 to vector<16x1xf32>
      %22 = arith.divf %20, %21 : vector<16x1xf32>
      %23 = vector.broadcast %22 : vector<16x1xf32> to vector<16x32xf32>
      %24 = arith.subf %18, %23 : vector<16x32xf32>
      %25 = arith.mulf %24, %24 : vector<16x32xf32>
      %cst_18 = arith.constant dense<0.000000e+00> : vector<16xf32>
      %26 = vector.multi_reduction <add>, %25, %cst_18 [1] : vector<16x32xf32> to vector<16xf32>
      %27 = vector.shape_cast %26 : vector<16xf32> to vector<16x1xf32>
      %cst_19 = arith.constant 3.200000e+01 : f32
      %28 = vector.broadcast %cst_19 : f32 to vector<16x1xf32>
      %29 = arith.divf %27, %28 : vector<16x1xf32>
      %30 = vector.broadcast %22 : vector<16x1xf32> to vector<16x32xf32>
      %31 = arith.subf %18, %30 : vector<16x32xf32>
      %cst_20 = arith.constant 9.99999996E-13 : f32
      %32 = vector.broadcast %cst_20 : f32 to vector<16x1xf32>
      %33 = arith.addf %29, %32 : vector<16x1xf32>
      %34 = math.rsqrt %33 : vector<16x1xf32>
      %35 = vector.broadcast %34 : vector<16x1xf32> to vector<16x32xf32>
      %36 = arith.mulf %31, %35 : vector<16x32xf32>
      %c0_21 = arith.constant 0 : index
      %c0_22 = arith.constant 0 : index
      %37 = vector.load %arg6[%c0_21, %c0_22] : memref<1x32xf32, #tpu.memory_space<vmem>>, vector<1x32xf32>
      %38 = vector.broadcast %37 : vector<1x32xf32> to vector<16x32xf32>
      %39 = arith.mulf %36, %38 : vector<16x32xf32>
      %c0_23 = arith.constant 0 : index
      %c0_24 = arith.constant 0 : index
      %40 = vector.load %arg7[%c0_23, %c0_24] : memref<1x32xf32, #tpu.memory_space<vmem>>, vector<1x32xf32>
      %41 = vector.broadcast %40 : vector<1x32xf32> to vector<16x32xf32>
      %42 = arith.addf %39, %41 : vector<16x32xf32>
      %43 = arith.truncf %42 : vector<16x32xf32> to vector<16x32xbf16>
      %c0_25 = arith.constant 0 : index
      %c0_26 = arith.constant 0 : index
      %44 = vector.load %arg8[%c0_25, %c0_26] : memref<16x32xbf16, #tpu.memory_space<vmem>>, vector<16x32xbf16>
      tpu.vector_store %arg8[%c0_25, %c0_26], %43 {strides = array<i32>} : memref<16x32xbf16, #tpu.memory_space<vmem>>, vector<16x32xbf16>,
    } else {
    }
    return
  }
  func.func @transform_0(%arg0: i32, %arg1: i32) -> (i32, i32) {
    %c0_i32 = arith.constant 0 : i32
    return %arg0, %arg1 : i32, i32
  }
  func.func @transform_1(%arg0: i32, %arg1: i32) -> (i32, i32) {
    %c0_i32 = arith.constant 0 : i32
    %c0_i32_0 = arith.constant 0 : i32
    return %arg1, %c0_i32 : i32, i32
  }
  func.func @transform_2(%arg0: i32, %arg1: i32) -> (i32, i32) {
    %c0_i32 = arith.constant 0 : i32
    %c0_i32_0 = arith.constant 0 : i32
    %c0_i32_1 = arith.constant 0 : i32
    return %c0_i32, %c0_i32_0 : i32, i32
  }
  func.func @transform_3(%arg0: i32, %arg1: i32) -> (i32, i32) {
    %c0_i32 = arith.constant 0 : i32
    %c0_i32_0 = arith.constant 0 : i32
    return %arg0, %c0_i32 : i32, i32
  }
  func.func @transform_4(%arg0: i32, %arg1: i32) -> (i32, i32) {
    %c0_i32 = arith.constant 0 : i32
    %c0_i32_0 = arith.constant 0 : i32
    %c0_i32_1 = arith.constant 0 : i32
    return %c0_i32, %c0_i32_0 : i32, i32
  }
  func.func @transform_5(%arg0: i32, %arg1: i32) -> (i32, i32) {
    %c0_i32 = arith.constant 0 : i32
    %c0_i32_0 = arith.constant 0 : i32
    %c0_i32_1 = arith.constant 0 : i32
    return %c0_i32, %c0_i32_0 : i32, i32
  }
  func.func @transform_6(%arg0: i32, %arg1: i32) -> (i32, i32) {
    %c0_i32 = arith.constant 0 : i32
    %c0_i32_0 = arith.constant 0 : i32
    return %arg0, %c0_i32 : i32, i32
  }
}

module attributes {stable_mosaic.version = 11 : i64} {
  func.func @_linear_kernel(%arg0: i32, %arg1: i32, %arg2: i32, %arg3: memref<16x32xbf16, #tpu.memory_space<vmem>>, %arg4: memref<32x64xbf16, #tpu.memory_space<vmem>>, %arg5: memref<1x64xf32, #tpu.memory_space<vmem>>, %arg6: memref<16x64xbf16, #tpu.memory_space<vmem>>, %arg7: memref<16x64xf32, #tpu.memory_space<vmem>>) attributes {dimension_semantics = [#tpu.dimension_semantics<parallel>, #tpu.dimension_semantics<parallel>, #tpu.dimension_semantics<arbitrary>], iteration_bounds = array<i64: 1, 1, 1>, scalar_prefetch = 0 : i64, scratch_operands = 1 : i64, tpu.core_type = #tpu.core_type<tc>, window_params = [{transform_indices = @transform_0, window_bounds = array<i64: 16, 32>}, {transform_indices = @transform_1, window_bounds = array<i64: 32, 64>}, {transform_indices = @transform_2, window_bounds = array<i64: 1, 64>}, {transform_indices = @transform_3, window_bounds = array<i64: 16, 64>}]} {
    %c0_i32 = arith.constant 0 : i32
    %0 = arith.cmpi eq, %arg2, %c0_i32 : i32
    %1 = arith.extui %0 : i1 to i32
    %c0_i32_0 = arith.constant 0 : i32
    %2 = arith.cmpi ne, %1, %c0_i32_0 : i32
    scf.if %2 {
      %cst_10 = arith.constant 0.000000e+00 : f32
      %12 = vector.broadcast %cst_10 : f32 to vector<16x64xf32>
      %c0_11 = arith.constant 0 : index
      %c0_12 = arith.constant 0 : index
      %13 = vector.load %arg7[%c0_11, %c0_12] : memref<16x64xf32, #tpu.memory_space<vmem>>, vector<16x64xf32>
      tpu.vector_store %arg7[%c0_11, %c0_12], %12 {strides = array<i32>} : memref<16x64xf32, #tpu.memory_space<vmem>>, vector<16x64xf32>,
    } else {
    }
    %c0 = arith.constant 0 : index
    %c0_1 = arith.constant 0 : index
    %3 = vector.load %arg7[%c0, %c0_1] : memref<16x64xf32, #tpu.memory_space<vmem>>, vector<16x64xf32>
    %c0_2 = arith.constant 0 : index
    %c0_3 = arith.constant 0 : index
    %4 = vector.load %arg3[%c0_2, %c0_3] : memref<16x32xbf16, #tpu.memory_space<vmem>>, vector<16x32xbf16>
    %c0_4 = arith.constant 0 : index
    %c0_5 = arith.constant 0 : index
    %5 = vector.load %arg4[%c0_4, %c0_5] : memref<32x64xbf16, #tpu.memory_space<vmem>>, vector<32x64xbf16>
    %cst = arith.constant dense<0.000000e+00> : vector<16x64xf32>
    %6 = tpu.matmul %4, %5, %cst {dimension_numbers = #tpu.dot_dimension_numbers<[1], [0], [0], [1], [0, 0, 1, 1], [], []>} : vector<16x32xbf16>, vector<32x64xbf16>, vector<16x64xf32> -> vector<16x64xf32>
    %7 = arith.addf %3, %6 : vector<16x64xf32>
    %c0_6 = arith.constant 0 : index
    %c0_7 = arith.constant 0 : index
    %8 = vector.load %arg7[%c0_6, %c0_7] : memref<16x64xf32, #tpu.memory_space<vmem>>, vector<16x64xf32>
    tpu.vector_store %arg7[%c0_6, %c0_7], %7 {strides = array<i32>} : memref<16x64xf32, #tpu.memory_space<vmem>>, vector<16x64xf32>,
    %c0_i32_8 = arith.constant 0 : i32
    %9 = arith.cmpi eq, %arg2, %c0_i32_8 : i32
    %10 = arith.extui %9 : i1 to i32
    %c0_i32_9 = arith.constant 0 : i32
    %11 = arith.cmpi ne, %10, %c0_i32_9 : i32
    scf.if %11 {
      %c0_10 = arith.constant 0 : index
      %c0_11 = arith.constant 0 : index
      %12 = vector.load %arg7[%c0_10, %c0_11] : memref<16x64xf32, #tpu.memory_space<vmem>>, vector<16x64xf32>
      %c0_12 = arith.constant 0 : index
      %c0_13 = arith.constant 0 : index
      %13 = vector.load %arg5[%c0_12, %c0_13] : memref<1x64xf32, #tpu.memory_space<vmem>>, vector<1x64xf32>
      %14 = vector.broadcast %13 : vector<1x64xf32> to vector<16x64xf32>
      %15 = arith.addf %12, %14 : vector<16x64xf32>
      %16 = arith.mulf %15, %15 : vector<16x64xf32>
      %17 = arith.mulf %15, %16 : vector<16x64xf32>
      %cst_14 = arith.constant 4.471500e-02 : f32
      %18 = vector.broadcast %cst_14 : f32 to vector<16x64xf32>
      %19 = arith.mulf %18, %17 : vector<16x64xf32>
      %20 = arith.addf %15, %19 : vector<16x64xf32>
      %cst_15 = arith.constant 0.797884583 : f32
      %21 = vector.broadcast %cst_15 : f32 to vector<16x64xf32>
      %22 = arith.mulf %21, %20 : vector<16x64xf32>
      %23 = math.tanh %22 : vector<16x64xf32>
      %cst_16 = arith.constant 1.000000e+00 : f32
      %24 = vector.broadcast %cst_16 : f32 to vector<16x64xf32>
      %25 = arith.addf %24, %23 : vector<16x64xf32>
      %cst_17 = arith.constant 5.000000e-01 : f32
      %26 = vector.broadcast %cst_17 : f32 to vector<16x64xf32>
      %27 = arith.mulf %26, %25 : vector<16x64xf32>
      %28 = arith.mulf %15, %27 : vector<16x64xf32>
      %29 = arith.truncf %28 : vector<16x64xf32> to vector<16x64xbf16>
      %c0_18 = arith.constant 0 : index
      %c0_19 = arith.constant 0 : index
      %30 = vector.load %arg6[%c0_18, %c0_19] : memref<16x64xbf16, #tpu.memory_space<vmem>>, vector<16x64xbf16>
      tpu.vector_store %arg6[%c0_18, %c0_19], %29 {strides = array<i32>} : memref<16x64xbf16, #tpu.memory_space<vmem>>, vector<16x64xbf16>,
    } else {
    }
    return
  }
  func.func @transform_0(%arg0: i32, %arg1: i32, %arg2: i32) -> (i32, i32) {
    %c0_i32 = arith.constant 0 : i32
    return %arg0, %arg2 : i32, i32
  }
  func.func @transform_1(%arg0: i32, %arg1: i32, %arg2: i32) -> (i32, i32) {
    %c0_i32 = arith.constant 0 : i32
    return %arg2, %arg1 : i32, i32
  }
  func.func @transform_2(%arg0: i32, %arg1: i32, %arg2: i32) -> (i32, i32) {
    %c0_i32 = arith.constant 0 : i32
    %c0_i32_0 = arith.constant 0 : i32
    return %c0_i32, %arg1 : i32, i32
  }
  func.func @transform_3(%arg0: i32, %arg1: i32, %arg2: i32) -> (i32, i32) {
    %c0_i32 = arith.constant 0 : i32
    return %arg0, %arg1 : i32, i32
  }
}

module attributes {stable_mosaic.version = 11 : i64} {
  func.func @_linear_residual_ln_kernel(%arg0: i32, %arg1: i32, %arg2: memref<16x64xbf16, #tpu.memory_space<vmem>>, %arg3: memref<64x32xbf16, #tpu.memory_space<vmem>>, %arg4: memref<1x32xf32, #tpu.memory_space<vmem>>, %arg5: memref<16x32xbf16, #tpu.memory_space<vmem>>, %arg6: memref<1x32xf32, #tpu.memory_space<vmem>>, %arg7: memref<1x32xf32, #tpu.memory_space<vmem>>, %arg8: memref<16x32xbf16, #tpu.memory_space<vmem>>, %arg9: memref<16x32xf32, #tpu.memory_space<vmem>>) attributes {dimension_semantics = [#tpu.dimension_semantics<parallel>, #tpu.dimension_semantics<arbitrary>], iteration_bounds = array<i64: 1, 1>, scalar_prefetch = 0 : i64, scratch_operands = 1 : i64, tpu.core_type = #tpu.core_type<tc>, window_params = [{transform_indices = @transform_0, window_bounds = array<i64: 16, 64>}, {transform_indices = @transform_1, window_bounds = array<i64: 64, 32>}, {pipeline_mode = #tpu.pipeline_mode<synchronous>, transform_indices = @transform_2, window_bounds = array<i64: 1, 32>}, {transform_indices = @transform_3, window_bounds = array<i64: 16, 32>}, {pipeline_mode = #tpu.pipeline_mode<synchronous>, transform_indices = @transform_4, window_bounds = array<i64: 1, 32>}, {pipeline_mode = #tpu.pipeline_mode<synchronous>, transform_indices = @transform_5, window_bounds = array<i64: 1, 32>}, {transform_indices = @transform_6, window_bounds = array<i64: 16, 32>}]} {
    %c0_i32 = arith.constant 0 : i32
    %0 = arith.cmpi eq, %arg1, %c0_i32 : i32
    %1 = arith.extui %0 : i1 to i32
    %c0_i32_0 = arith.constant 0 : i32
    %2 = arith.cmpi ne, %1, %c0_i32_0 : i32
    scf.if %2 {
      %cst_10 = arith.constant 0.000000e+00 : f32
      %12 = vector.broadcast %cst_10 : f32 to vector<16x32xf32>
      %c0_11 = arith.constant 0 : index
      %c0_12 = arith.constant 0 : index
      %13 = vector.load %arg9[%c0_11, %c0_12] : memref<16x32xf32, #tpu.memory_space<vmem>>, vector<16x32xf32>
      tpu.vector_store %arg9[%c0_11, %c0_12], %12 {strides = array<i32>} : memref<16x32xf32, #tpu.memory_space<vmem>>, vector<16x32xf32>,
    } else {
    }
    %c0 = arith.constant 0 : index
    %c0_1 = arith.constant 0 : index
    %3 = vector.load %arg9[%c0, %c0_1] : memref<16x32xf32, #tpu.memory_space<vmem>>, vector<16x32xf32>
    %c0_2 = arith.constant 0 : index
    %c0_3 = arith.constant 0 : index
    %4 = vector.load %arg2[%c0_2, %c0_3] : memref<16x64xbf16, #tpu.memory_space<vmem>>, vector<16x64xbf16>
    %c0_4 = arith.constant 0 : index
    %c0_5 = arith.constant 0 : index
    %5 = vector.load %arg3[%c0_4, %c0_5] : memref<64x32xbf16, #tpu.memory_space<vmem>>, vector<64x32xbf16>
    %cst = arith.constant dense<0.000000e+00> : vector<16x32xf32>
    %6 = tpu.matmul %4, %5, %cst {dimension_numbers = #tpu.dot_dimension_numbers<[1], [0], [0], [1], [0, 0, 1, 1], [], []>} : vector<16x64xbf16>, vector<64x32xbf16>, vector<16x32xf32> -> vector<16x32xf32>
    %7 = arith.addf %3, %6 : vector<16x32xf32>
    %c0_6 = arith.constant 0 : index
    %c0_7 = arith.constant 0 : index
    %8 = vector.load %arg9[%c0_6, %c0_7] : memref<16x32xf32, #tpu.memory_space<vmem>>, vector<16x32xf32>
    tpu.vector_store %arg9[%c0_6, %c0_7], %7 {strides = array<i32>} : memref<16x32xf32, #tpu.memory_space<vmem>>, vector<16x32xf32>,
    %c0_i32_8 = arith.constant 0 : i32
    %9 = arith.cmpi eq, %arg1, %c0_i32_8 : i32
    %10 = arith.extui %9 : i1 to i32
    %c0_i32_9 = arith.constant 0 : i32
    %11 = arith.cmpi ne, %10, %c0_i32_9 : i32
    scf.if %11 {
      %c0_10 = arith.constant 0 : index
      %c0_11 = arith.constant 0 : index
      %12 = vector.load %arg9[%c0_10, %c0_11] : memref<16x32xf32, #tpu.memory_space<vmem>>, vector<16x32xf32>
      %c0_12 = arith.constant 0 : index
      %c0_13 = arith.constant 0 : index
      %13 = vector.load %arg4[%c0_12, %c0_13] : memref<1x32xf32, #tpu.memory_space<vmem>>, vector<1x32xf32>
      %14 = vector.broadcast %13 : vector<1x32xf32> to vector<16x32xf32>
      %15 = arith.addf %12, %14 : vector<16x32xf32>
      %c0_14 = arith.constant 0 : index
      %c0_15 = arith.constant 0 : index
      %16 = vector.load %arg5[%c0_14, %c0_15] : memref<16x32xbf16, #tpu.memory_space<vmem>>, vector<16x32xbf16>
      %17 = arith.extf %16 : vector<16x32xbf16> to vector<16x32xf32>
      %18 = arith.addf %15, %17 : vector<16x32xf32>
      %cst_16 = arith.constant dense<0.000000e+00> : vector<16xf32>
      %19 = vector.multi_reduction <add>, %18, %cst_16 [1] : vector<16x32xf32> to vector<16xf32>
      %20 = vector.shape_cast %19 : vector<16xf32> to vector<16x1xf32>
      %cst_17 = arith.constant 3.200000e+01 : f32
      %21 = vector.broadcast %cst_17 : f32 to vector<16x1xf32>
      %22 = arith.divf %20, %21 : vector<16x1xf32>
      %23 = vector.broadcast %22 : vector<16x1xf32> to vector<16x32xf32>
      %24 = arith.subf %18, %23 : vector<16x32xf32>
      %25 = arith.mulf %24, %24 : vector<16x32xf32>
      %cst_18 = arith.constant dense<0.000000e+00> : vector<16xf32>
      %26 = vector.multi_reduction <add>, %25, %cst_18 [1] : vector<16x32xf32> to vector<16xf32>
      %27 = vector.shape_cast %26 : vector<16xf32> to vector<16x1xf32>
      %cst_19 = arith.constant 3.200000e+01 : f32
      %28 = vector.broadcast %cst_19 : f32 to vector<16x1xf32>
      %29 = arith.divf %27, %28 : vector<16x1xf32>
      %30 = vector.broadcast %22 : vector<16x1xf32> to vector<16x32xf32>
      %31 = arith.subf %18, %30 : vector<16x32xf32>
      %cst_20 = arith.constant 9.99999996E-13 : f32
      %32 = vector.broadcast %cst_20 : f32 to vector<16x1xf32>
      %33 = arith.addf %29, %32 : vector<16x1xf32>
      %34 = math.rsqrt %33 : vector<16x1xf32>
      %35 = vector.broadcast %34 : vector<16x1xf32> to vector<16x32xf32>
      %36 = arith.mulf %31, %35 : vector<16x32xf32>
      %c0_21 = arith.constant 0 : index
      %c0_22 = arith.constant 0 : index
      %37 = vector.load %arg6[%c0_21, %c0_22] : memref<1x32xf32, #tpu.memory_space<vmem>>, vector<1x32xf32>
      %38 = vector.broadcast %37 : vector<1x32xf32> to vector<16x32xf32>
      %39 = arith.mulf %36, %38 : vector<16x32xf32>
      %c0_23 = arith.constant 0 : index
      %c0_24 = arith.constant 0 : index
      %40 = vector.load %arg7[%c0_23, %c0_24] : memref<1x32xf32, #tpu.memory_space<vmem>>, vector<1x32xf32>
      %41 = vector.broadcast %40 : vector<1x32xf32> to vector<16x32xf32>
      %42 = arith.addf %39, %41 : vector<16x32xf32>
      %43 = arith.truncf %42 : vector<16x32xf32> to vector<16x32xbf16>
      %c0_25 = arith.constant 0 : index
      %c0_26 = arith.constant 0 : index
      %44 = vector.load %arg8[%c0_25, %c0_26] : memref<16x32xbf16, #tpu.memory_space<vmem>>, vector<16x32xbf16>
      tpu.vector_store %arg8[%c0_25, %c0_26], %43 {strides = array<i32>} : memref<16x32xbf16, #tpu.memory_space<vmem>>, vector<16x32xbf16>,
    } else {
    }
    return
  }
  func.func @transform_0(%arg0: i32, %arg1: i32) -> (i32, i32) {
    %c0_i32 = arith.constant 0 : i32
    return %arg0, %arg1 : i32, i32
  }
  func.func @transform_1(%arg0: i32, %arg1: i32) -> (i32, i32) {
    %c0_i32 = arith.constant 0 : i32
    %c0_i32_0 = arith.constant 0 : i32
    return %arg1, %c0_i32 : i32, i32
  }
  func.func @transform_2(%arg0: i32, %arg1: i32) -> (i32, i32) {
    %c0_i32 = arith.constant 0 : i32
    %c0_i32_0 = arith.constant 0 : i32
    %c0_i32_1 = arith.constant 0 : i32
    return %c0_i32, %c0_i32_0 : i32, i32
  }
  func.func @transform_3(%arg0: i32, %arg1: i32) -> (i32, i32) {
    %c0_i32 = arith.constant 0 : i32
    %c0_i32_0 = arith.constant 0 : i32
    return %arg0, %c0_i32 : i32, i32
  }
  func.func @transform_4(%arg0: i32, %arg1: i32) -> (i32, i32) {
    %c0_i32 = arith.constant 0 : i32
    %c0_i32_0 = arith.constant 0 : i32
    %c0_i32_1 = arith.constant 0 : i32
    return %c0_i32, %c0_i32_0 : i32, i32
  }
  func.func @transform_5(%arg0: i32, %arg1: i32) -> (i32, i32) {
    %c0_i32 = arith.constant 0 : i32
    %c0_i32_0 = arith.constant 0 : i32
    %c0_i32_1 = arith.constant 0 : i32
    return %c0_i32, %c0_i32_0 : i32, i32
  }
  func.func @transform_6(%arg0: i32, %arg1: i32) -> (i32, i32) {
    %c0_i32 = arith.constant 0 : i32
    %c0_i32_0 = arith.constant 0 : i32
    return %arg0, %c0_i32 : i32, i32
  }
}

module attributes {stable_mosaic.version = 11 : i64} {
  func.func @_pooler_head_kernel(%arg0: memref<2x32xbf16, #tpu.memory_space<vmem>>, %arg1: memref<32x32xbf16, #tpu.memory_space<vmem>>, %arg2: memref<1x32xf32, #tpu.memory_space<vmem>>, %arg3: memref<32x1xbf16, #tpu.memory_space<vmem>>, %arg4: memref<1x1xf32, #tpu.memory_space<vmem>>, %arg5: memref<2x1xf32, #tpu.memory_space<vmem>>) attributes {dimension_semantics = [], scalar_prefetch = 0 : i64, scratch_operands = 0 : i64, tpu.core_type = #tpu.core_type<tc>} {
    %c0 = arith.constant 0 : index
    %c0_0 = arith.constant 0 : index
    %0 = vector.load %arg0[%c0, %c0_0] : memref<2x32xbf16, #tpu.memory_space<vmem>>, vector<2x32xbf16>
    %c0_1 = arith.constant 0 : index
    %c0_2 = arith.constant 0 : index
    %1 = vector.load %arg1[%c0_1, %c0_2] : memref<32x32xbf16, #tpu.memory_space<vmem>>, vector<32x32xbf16>
    %cst = arith.constant dense<0.000000e+00> : vector<2x32xf32>
    %2 = tpu.matmul %0, %1, %cst {dimension_numbers = #tpu.dot_dimension_numbers<[1], [0], [0], [1], [0, 0, 1, 1], [], []>} : vector<2x32xbf16>, vector<32x32xbf16>, vector<2x32xf32> -> vector<2x32xf32>
    %c0_3 = arith.constant 0 : index
    %c0_4 = arith.constant 0 : index
    %3 = vector.load %arg2[%c0_3, %c0_4] : memref<1x32xf32, #tpu.memory_space<vmem>>, vector<1x32xf32>
    %4 = vector.broadcast %3 : vector<1x32xf32> to vector<2x32xf32>
    %5 = arith.addf %2, %4 : vector<2x32xf32>
    %6 = math.tanh %5 : vector<2x32xf32>
    %7 = arith.truncf %6 : vector<2x32xf32> to vector<2x32xbf16>
    %c0_5 = arith.constant 0 : index
    %c0_6 = arith.constant 0 : index
    %8 = vector.load %arg3[%c0_5, %c0_6] : memref<32x1xbf16, #tpu.memory_space<vmem>>, vector<32x1xbf16>
    %cst_7 = arith.constant dense<0.000000e+00> : vector<2x1xf32>
    %9 = tpu.matmul %7, %8, %cst_7 {dimension_numbers = #tpu.dot_dimension_numbers<[1], [0], [0], [1], [0, 0, 1, 1], [], []>} : vector<2x32xbf16>, vector<32x1xbf16>, vector<2x1xf32> -> vector<2x1xf32>
    %c0_8 = arith.constant 0 : index
    %c0_9 = arith.constant 0 : index
    %10 = vector.load %arg4[%c0_8, %c0_9] : memref<1x1xf32, #tpu.memory_space<vmem>>, vector<1x1xf32>
    %11 = vector.broadcast %10 : vector<1x1xf32> to vector<2x1xf32>
    %12 = arith.addf %9, %11 : vector<2x1xf32>
    %c0_10 = arith.constant 0 : index
    %c0_11 = arith.constant 0 : index
    %13 = vector.load %arg5[%c0_10, %c0_11] : memref<2x1xf32, #tpu.memory_space<vmem>>, vector<2x1xf32>
    tpu.vector_store %arg5[%c0_10, %c0_11], %12 {strides = array<i32>} : memref<2x1xf32, #tpu.memory_space<vmem>>, vector<2x1xf32>,
    return
  }
}

</mosaic_0001>

<llo_original>
// kernel: bert_classifier_forward.13
$region0: #{bert_classifier_forward.13}
  #allocation0 [shape = 'u32[]', space=smem, size = 0x4, offset = 0x4, fixed_abs, tag = 'smem constant byte address 0x4 - core index']
  #allocation1 [shape = 'u32[144,128]{1,0:T(1,128)}', space=vmem, size = 0x12000, scoped, tag = 'internal scratch']
  #allocation2 [shape = 'f32[16,64]{1,0:T(8,128)}', space=vmem, size = 0x2000, scoped, tag = 'scratch operand']
  %s0 = inlined_call_operand.vmem [shape: bf16[16,32], index: 0, kind: input, shape index: {}]
  %s1 = inlined_call_operand.vmem [shape: bf16[32,64], index: 1, kind: input, shape index: {}]
  %s2 = inlined_call_operand.vmem [shape: f32[1,64], index: 2, kind: input, shape index: {}]
  %s3 = inlined_call_operand.vmem [shape: bf16[16,64], index: 3, kind: output, shape index: {}]
  %s4 = sld [smem:[#allocation0]]
  $region30: #{bert_classifier_forward.13} parent=0
    _
  %s6 = ssub.s32 1, %s4
  %s7 = scalar_select 0, %s6, %s4
  // Predicated region
  $region2: #{bert_classifier_forward.13} parent=0 // pred_check
    _
  $region3: #{bert_classifier_forward.13} parent=0 // pred_check_branch
    %9 = sbr.rel (0) target = $region5
  $region4: #{bert_classifier_forward.13} parent=0 // pred_region
    _
  $region5: #{bert_classifier_forward.13} parent=0 // pred_fallthru
    _
  // Predicated region
  $region6: #{bert_classifier_forward.13} parent=0 // pred_check
    _
  $region7: #{bert_classifier_forward.13} parent=0 // pred_check_branch
    %11 = sbr.rel (0) target = $region9
  $region8: #{bert_classifier_forward.13} parent=0 // pred_region
    _
  $region9: #{bert_classifier_forward.13} parent=0 // pred_fallthru
    _
  // Predicated region
  $region10: #{bert_classifier_forward.13} parent=0 // pred_check
    _
  $region11: #{bert_classifier_forward.13} parent=0 // pred_check_branch
    %13 = sbr.rel (0) target = $region13
  $region12: #{bert_classifier_forward.13} parent=0 // pred_region
    _
  $region13: #{bert_classifier_forward.13} parent=0 // pred_fallthru
    _
  %p15 = scmp.eq.s32.totalorder 0, 0
  // Predicated region
  $region14: #{bert_classifier_forward.13} parent=0 // pred_check
    %p16 = pneg %p15
  $region15: #{bert_classifier_forward.13} parent=0 // pred_check_branch
    %18 = sbr.rel (%p16) target = $region17
  $region16: #{bert_classifier_forward.13} parent=0 // pred_region
    %vm19 = vcmask 523264
    %20 = vst.msk [vmem:[#allocation2] sm:$0xff] %vm19, 0.0
    %21 = vst.msk [vmem:[#allocation2 + $0x8] sm:$0xff] %vm19, 0.0
  $region17: #{bert_classifier_forward.13} parent=0 // pred_fallthru
    _
  %v22 = vld [vmem:[#allocation2] sm:$0xff]
  %v23 = vld [vmem:[#allocation2 + $0x8] sm:$0xff]
  %v24 = vld [vmem:[%s0] sm:$0xf]
  %v25 = vld [vmem:[%s0 + $0x4] sm:$0xf]
  %v26 = vld [vmem:[%s1] sm:$0xf]
  %v27 = vld [vmem:[%s1 + $0x4] sm:$0xf]
  %v28 = vld [vmem:[%s1 + $0x8] sm:$0xf]
  %v29 = vld [vmem:[%s1 + $0xc] sm:$0xf]
  %v32 = vunpack.c.l.b16 %v24
  %v33 = vunpack.c.l.b16 %v25
  %v34 = vpack.c.b16 %v33, %v32
  %v39 = vunpack.c.l.b16 %v26
  %v40 = vunpack.c.l.b16 %v27
  %v41 = vunpack.c.l.b16 %v28
  %v42 = vunpack.c.l.b16 %v29
  %v43 = vpack.c.b16 %v40, %v39
  %v44 = vpack.c.b16 %v42, %v41
  %vm47 = vcmask 261120
  %v49 = vsel %vm47, %v34, 0
  %51 = vmatprep.subr.bf16.mxu0 0
  %52 = vmatpush1.bf16.msra.mxu0 0
  %53 = vmatprep.subr.bf16.mxu0 0
  %54 = vmatpush1.bf16.msra.mxu0 0
  %55 = vmatprep.subr.bf16.mxu0 0
  %56 = vmatpush1.bf16.msra.mxu0 0
  %57 = vmatprep.subr.bf16.mxu0 0
  %58 = vmatpush1.bf16.msra.mxu0 0
  %59 = vmatprep.subr.bf16.mxu0 0
  %60 = vmatpush1.bf16.msra.mxu0 0
  %61 = vmatprep.subr.bf16.mxu0 0
  %62 = vmatpush1.bf16.msra.mxu0 0
  %63 = vmatprep.subr.bf16.mxu0 0
  %64 = vmatpush1.bf16.msra.mxu0 %v44
  %65 = vmatprep.subr.bf16.mxu0 0
  %66 = vmatpush1.bf16.msra.mxu0 %v43
  %67 = vmatprep.subr.bf16.mxu0 0
  %68 = vmatpush2.bf16.msra.mxu0 0
  %69 = vmatprep.subr.bf16.mxu0 0
  %70 = vmatpush2.bf16.msra.mxu0 0
  %71 = vmatprep.subr.bf16.mxu0 0
  %72 = vmatpush2.bf16.msra.mxu0 0
  %73 = vmatprep.subr.bf16.mxu0 0
  %74 = vmatpush2.bf16.msra.mxu0 0
  %75 = vmatprep.subr.bf16.mxu0 0
  %76 = vmatpush2.bf16.msra.mxu0 0
  %77 = vmatprep.subr.bf16.mxu0 0
  %78 = vmatpush2.bf16.msra.mxu0 0
  %79 = vmatprep.subr.bf16.mxu0 0
  %80 = vmatpush2.bf16.msra.mxu0 0
  %81 = vmatprep.subr.bf16.mxu0 0
  %82 = vmatpush2.bf16.msra.mxu0 0
  %83 = vmatprep.mubr.bf16.mxu0 0
  %84 = vmatmul.mubr.bf16.gmra.mxu0 %v49
  %v85 = vpop.f32.mrf.mxu0
  %v86 = vadd.f32 0.0, %v85
  %v87 = vpop.f32.mrf.mxu0
  %v88 = vpop.f32.mrf.mxu0
  %v89 = vadd.f32 0.0, %v88
  %v90 = vpop.f32.mrf.mxu0
  %91 = vdwg.mxu0
  %v92 = vadd.f32 %v22, %v86
  %v93 = vadd.f32 %v23, %v89
  %vm94 = vcmask 523264
  %95 = vst.msk [vmem:[#allocation2] sm:$0xff] %vm94, %v92
  %96 = vst.msk [vmem:[#allocation2 + $0x8] sm:$0xff] %vm94, %v93
  // Predicated region
  $region18: #{bert_classifier_forward.13} parent=0 // pred_check
    %p97 = pneg %p15
  $region19: #{bert_classifier_forward.13} parent=0 // pred_check_branch
    %99 = sbr.rel (%p97) target = $region21
  $region20: #{bert_classifier_forward.13} parent=0 // pred_region
    %v100 = vld [vmem:[#allocation2] sm:$0xff]
    %v101 = vld [vmem:[#allocation2 + $0x8] sm:$0xff]
    %v102 = vld [vmem:[%s2] sm:$0x1]
    %v104 = vlaneseq
    %v105 = vshrl.u32 %v104, 7
    %v106 = vsub.s32 0, %v105
    %v107 = vrot.slane %v102, %v106
    %v109 = vadd.f32 %v100, %v107
    %v110 = vadd.f32 %v101, %v107
    %v111 = vmul.f32 %v109, %v109
    %v112 = vmul.f32 %v110, %v110
    %v113 = vmul.f32 %v109, %v111
    %v114 = vmul.f32 %v110, %v112
    %v115 = vmul.f32 %v113, 0.044715
    %v116 = vmul.f32 %v114, 0.044715
    %v117 = vadd.f32 %v109, %v115
    %v118 = vadd.f32 %v110, %v116
    %v119 = vmul.f32 %v117, 0.7978846
    %v120 = vmul.f32 %v118, 0.7978846
    %v121 = vtanh.pop %v119
    %v122 = vtanh.pop %v120
    %v123 = vadd.f32 %v121, 1.0
    %v124 = vadd.f32 %v122, 1.0
    %v125 = vmul.f32 %v123, 0.5
    %v126 = vmul.f32 %v124, 0.5
    %v127 = vmul.f32 %v109, %v125
    %v128 = vmul.f32 %v110, %v126
    %v129 = vpack.c.bf16 %v128, %v127
    %v131 = vunpack.c.l.b16 %v129
    %v132 = vunpack.c.h.b16 %v129
    %v133 = vpack.c.b16 %v131, %v131
    %v134 = vpack.c.b16 %v132, %v132
    %vm137 = vcmask 519168
    %138 = vst.msk [vmem:[%s3] sm:$0xf] %vm137, %v133
    %139 = vst.msk [vmem:[%s3 + $0x4] sm:$0xf] %vm137, %v134
  $region21: #{bert_classifier_forward.13} parent=0 // pred_fallthru
    _
  // Predicated region
  $region22: #{bert_classifier_forward.13} parent=0 // pred_check
    _
  $region23: #{bert_classifier_forward.13} parent=0 // pred_check_branch
    %141 = sbr.rel (0) target = $region25
  $region24: #{bert_classifier_forward.13} parent=0 // pred_region
    _
  $region25: #{bert_classifier_forward.13} parent=0 // pred_fallthru
    _
  // Predicated region
  $region26: #{bert_classifier_forward.13} parent=0 // pred_check
    _
  $region27: #{bert_classifier_forward.13} parent=0 // pred_check_branch
    %143 = sbr.rel (0) target = $region29
  $region28: #{bert_classifier_forward.13} parent=0 // pred_region
    _
  $region29: #{bert_classifier_forward.13} parent=0 // pred_fallthru
    _

// kernel: bert_classifier_forward.10
$region0: #{bert_classifier_forward.10}
  #allocation0 [shape = 'u32[]', space=smem, size = 0x4, offset = 0x4, fixed_abs, tag = 'smem constant byte address 0x4 - core index']
  #allocation1 [shape = 'u32[144,128]{1,0:T(1,128)}', space=vmem, size = 0x12000, scoped, tag = 'internal scratch']
  %s0 = inlined_call_operand.vmem [shape: f32[16,32], index: 0, kind: input, shape index: {}]
  %s1 = inlined_call_operand.vmem [shape: f32[1,32], index: 1, kind: input, shape index: {}]
  %s2 = inlined_call_operand.vmem [shape: f32[1,32], index: 2, kind: input, shape index: {}]
  %s3 = inlined_call_operand.vmem [shape: bf16[16,32], index: 3, kind: output, shape index: {}]
  %s4 = sld [smem:[#allocation0]]
  $region22: #{bert_classifier_forward.10} parent=0
    _
  %s6 = ssub.s32 1, %s4
  %s7 = scalar_select 0, %s6, %s4
  // Predicated region
  $region2: #{bert_classifier_forward.10} parent=0 // pred_check
    _
  $region3: #{bert_classifier_forward.10} parent=0 // pred_check_branch
    %9 = sbr.rel (0) target = $region5
  $region4: #{bert_classifier_forward.10} parent=0 // pred_region
    _
  $region5: #{bert_classifier_forward.10} parent=0 // pred_fallthru
    _
  // Predicated region
  $region6: #{bert_classifier_forward.10} parent=0 // pred_check
    _
  $region7: #{bert_classifier_forward.10} parent=0 // pred_check_branch
    %11 = sbr.rel (0) target = $region9
  $region8: #{bert_classifier_forward.10} parent=0 // pred_region
    _
  $region9: #{bert_classifier_forward.10} parent=0 // pred_fallthru
    _
  // Predicated region
  $region10: #{bert_classifier_forward.10} parent=0 // pred_check
    _
  $region11: #{bert_classifier_forward.10} parent=0 // pred_check_branch
    %13 = sbr.rel (0) target = $region13
  $region12: #{bert_classifier_forward.10} parent=0 // pred_region
    _
  $region13: #{bert_classifier_forward.10} parent=0 // pred_fallthru
    _
  %v14 = vld [vmem:[%s0] sm:$0xff]
  %v15 = vld [vmem:[%s0 + $0x8] sm:$0xff]
  %vm16 = vcmask 261120
  %v17 = vsel %vm16, %v14, 0.0
  %18 = vadd.xlane.f32.xlu0 %v17
  %v19 = vpop.xlane.xlu0 %18
  %v20 = vsel %vm16, %v15, 0.0
  %21 = vadd.xlane.f32.xlu0 %v20
  %v22 = vpop.xlane.xlu0 %21
  %v23 = vrcp.pop 32.0
  %v24 = vmul.f32 %v19, %v23
  %v25 = vmul.f32 %v22, %v23
  %v26 = vsub.f32 %v14, %v24
  %v27 = vsub.f32 %v15, %v25
  %v28 = vmul.f32 %v26, %v26
  %v29 = vmul.f32 %v27, %v27
  %v30 = vsel %vm16, %v28, 0.0
  %31 = vadd.xlane.f32.xlu0 %v30
  %v32 = vpop.xlane.xlu0 %31
  %v33 = vsel %vm16, %v29, 0.0
  %34 = vadd.xlane.f32.xlu0 %v33
  %v35 = vpop.xlane.xlu0 %34
  %v36 = vmul.f32 %v32, %v23
  %v37 = vmul.f32 %v35, %v23
  %v38 = vadd.f32 %v36, 1e-12
  %v39 = vadd.f32 %v37, 1e-12
  %v40 = vrsqrt.pop %v38
  %v41 = vrsqrt.pop %v39
  %v42 = vmul.f32 %v26, %v40
  %v43 = vmul.f32 %v27, %v41
  %v44 = vld [vmem:[%s1] sm:$0x1]
  %v46 = vlaneseq
  %v47 = vshrl.u32 %v46, 7
  %v48 = vsub.s32 0, %v47
  %v49 = vrot.slane %v44, %v48
  %v51 = vmul.f32 %v42, %v49
  %v52 = vmul.f32 %v43, %v49
  %v53 = vld [vmem:[%s2] sm:$0x1]
  %v55 = vlaneseq
  %v56 = vshrl.u32 %v55, 7
  %v57 = vsub.s32 0, %v56
  %v58 = vrot.slane %v53, %v57
  %v60 = vadd.f32 %v51, %v58
  %v61 = vadd.f32 %v52, %v58
  %v62 = vpack.c.bf16 %v61, %v60
  %v64 = vunpack.c.l.b16 %v62
  %v65 = vunpack.c.h.b16 %v62
  %v66 = vpack.c.b16 %v64, %v64
  %v67 = vpack.c.b16 %v65, %v65
  %vm70 = vcmask 257024
  %71 = vst.msk [vmem:[%s3] sm:$0xf] %vm70, %v66
  %72 = vst.msk [vmem:[%s3 + $0x4] sm:$0xf] %vm70, %v67
  // Predicated region
  $region14: #{bert_classifier_forward.10} parent=0 // pred_check
    _
  $region15: #{bert_classifier_forward.10} parent=0 // pred_check_branch
    %74 = sbr.rel (0) target = $region17
  $region16: #{bert_classifier_forward.10} parent=0 // pred_region
    _
  $region17: #{bert_classifier_forward.10} parent=0 // pred_fallthru
    _
  // Predicated region
  $region18: #{bert_classifier_forward.10} parent=0 // pred_check
    _
  $region19: #{bert_classifier_forward.10} parent=0 // pred_check_branch
    %76 = sbr.rel (0) target = $region21
  $region20: #{bert_classifier_forward.10} parent=0 // pred_region
    _
  $region21: #{bert_classifier_forward.10} parent=0 // pred_fallthru
    _

// kernel: bert_classifier_forward.12
$region0: #{bert_classifier_forward.12}
  #allocation0 [shape = 'u32[]', space=smem, size = 0x4, offset = 0x4, fixed_abs, tag = 'smem constant byte address 0x4 - core index']
  #allocation1 [shape = 'u32[144,128]{1,0:T(1,128)}', space=vmem, size = 0x12000, scoped, tag = 'internal scratch']
  #allocation2 [shape = 'f32[16,32]{1,0:T(8,128)}', space=vmem, size = 0x2000, scoped, tag = 'scratch operand']
  %s0 = inlined_call_operand.vmem [shape: bf16[16,32], index: 0, kind: input, shape index: {}]
  %s1 = inlined_call_operand.vmem [shape: bf16[32,32], index: 1, kind: input, shape index: {}]
  %s2 = inlined_call_operand.vmem [shape: f32[1,32], index: 2, kind: input, shape index: {}]
  %s3 = inlined_call_operand.vmem [shape: bf16[16,32], index: 3, kind: input, shape index: {}]
  %s4 = inlined_call_operand.vmem [shape: f32[1,32], index: 4, kind: input, shape index: {}]
  %s5 = inlined_call_operand.vmem [shape: f32[1,32], index: 5, kind: input, shape index: {}]
  %s6 = inlined_call_operand.vmem [shape: bf16[16,32], index: 6, kind: output, shape index: {}]
  %s7 = sld [smem:[#allocation0]]
  $region42: #{bert_classifier_forward.12} parent=0
    _
  %s9 = ssub.s32 1, %s7
  %s10 = scalar_select 0, %s9, %s7
  // Predicated region
  $region2: #{bert_classifier_forward.12} parent=0 // pred_check
    _
  $region3: #{bert_classifier_forward.12} parent=0 // pred_check_branch
    %12 = sbr.rel (0) target = $region5
  $region4: #{bert_classifier_forward.12} parent=0 // pred_region
    _
  $region5: #{bert_classifier_forward.12} parent=0 // pred_fallthru
    _
  // Predicated region
  $region6: #{bert_classifier_forward.12} parent=0 // pred_check
    _
  $region7: #{bert_classifier_forward.12} parent=0 // pred_check_branch
    %14 = sbr.rel (0) target = $region9
  $region8: #{bert_classifier_forward.12} parent=0 // pred_region
    _
  $region9: #{bert_classifier_forward.12} parent=0 // pred_fallthru
    _
  // Predicated region
  $region10: #{bert_classifier_forward.12} parent=0 // pred_check
    _
  $region11: #{bert_classifier_forward.12} parent=0 // pred_check_branch
    %16 = sbr.rel (0) target = $region13
  $region12: #{bert_classifier_forward.12} parent=0 // pred_region
    _
  $region13: #{bert_classifier_forward.12} parent=0 // pred_fallthru
    _
  // Predicated region
  $region14: #{bert_classifier_forward.12} parent=0 // pred_check
    _
  $region15: #{bert_classifier_forward.12} parent=0 // pred_check_branch
    %18 = sbr.rel (0) target = $region17
  $region16: #{bert_classifier_forward.12} parent=0 // pred_region
    _
  $region17: #{bert_classifier_forward.12} parent=0 // pred_fallthru
    _
  // Predicated region
  $region18: #{bert_classifier_forward.12} parent=0 // pred_check
    _
  $region19: #{bert_classifier_forward.12} parent=0 // pred_check_branch
    %20 = sbr.rel (0) target = $region21
  $region20: #{bert_classifier_forward.12} parent=0 // pred_region
    _
  $region21: #{bert_classifier_forward.12} parent=0 // pred_fallthru
    _
  // Predicated region
  $region22: #{bert_classifier_forward.12} parent=0 // pred_check
    _
  $region23: #{bert_classifier_forward.12} parent=0 // pred_check_branch
    %22 = sbr.rel (0) target = $region25
  $region24: #{bert_classifier_forward.12} parent=0 // pred_region
    _
  $region25: #{bert_classifier_forward.12} parent=0 // pred_fallthru
    _
  %p24 = scmp.eq.s32.totalorder 0, 0
  // Predicated region
  $region26: #{bert_classifier_forward.12} parent=0 // pred_check
    %p25 = pneg %p24
  $region27: #{bert_classifier_forward.12} parent=0 // pred_check_branch
    %27 = sbr.rel (%p25) target = $region29
  $region28: #{bert_classifier_forward.12} parent=0 // pred_region
    %vm28 = vcmask 261120
    %29 = vst.msk [vmem:[#allocation2] sm:$0xff] %vm28, 0.0
    %30 = vst.msk [vmem:[#allocation2 + $0x8] sm:$0xff] %vm28, 0.0
  $region29: #{bert_classifier_forward.12} parent=0 // pred_fallthru
    _
  %v31 = vld [vmem:[#allocation2] sm:$0xff]
  %v32 = vld [vmem:[#allocation2 + $0x8] sm:$0xff]
  %v33 = vld [vmem:[%s0] sm:$0xf]
  %v34 = vld [vmem:[%s0 + $0x4] sm:$0xf]
  %v35 = vld [vmem:[%s1] sm:$0xf]
  %v36 = vld [vmem:[%s1 + $0x4] sm:$0xf]
  %v37 = vld [vmem:[%s1 + $0x8] sm:$0xf]
  %v38 = vld [vmem:[%s1 + $0xc] sm:$0xf]
  %v41 = vunpack.c.l.b16 %v33
  %v42 = vunpack.c.l.b16 %v34
  %v43 = vpack.c.b16 %v42, %v41
  %v48 = vunpack.c.l.b16 %v35
  %v49 = vunpack.c.l.b16 %v36
  %v50 = vunpack.c.l.b16 %v37
  %v51 = vunpack.c.l.b16 %v38
  %v52 = vpack.c.b16 %v49, %v48
  %v53 = vpack.c.b16 %v51, %v50
  %vm56 = vcmask 261120
  %v58 = vsel %vm56, %v43, 0
  %60 = vmatprep.subr.bf16.mxu0 0
  %61 = vmatpush1.bf16.msra.mxu0 0
  %62 = vmatprep.subr.bf16.mxu0 0
  %63 = vmatpush1.bf16.msra.mxu0 0
  %64 = vmatprep.subr.bf16.mxu0 0
  %65 = vmatpush1.bf16.msra.mxu0 0
  %66 = vmatprep.subr.bf16.mxu0 0
  %67 = vmatpush1.bf16.msra.mxu0 0
  %68 = vmatprep.subr.bf16.mxu0 0
  %69 = vmatpush1.bf16.msra.mxu0 0
  %70 = vmatprep.subr.bf16.mxu0 0
  %71 = vmatpush1.bf16.msra.mxu0 0
  %72 = vmatprep.subr.bf16.mxu0 0
  %73 = vmatpush1.bf16.msra.mxu0 %v53
  %74 = vmatprep.subr.bf16.mxu0 0
  %75 = vmatpush1.bf16.msra.mxu0 %v52
  %76 = vmatprep.subr.bf16.mxu0 0
  %77 = vmatpush2.bf16.msra.mxu0 0
  %78 = vmatprep.subr.bf16.mxu0 0
  %79 = vmatpush2.bf16.msra.mxu0 0
  %80 = vmatprep.subr.bf16.mxu0 0
  %81 = vmatpush2.bf16.msra.mxu0 0
  %82 = vmatprep.subr.bf16.mxu0 0
  %83 = vmatpush2.bf16.msra.mxu0 0
  %84 = vmatprep.subr.bf16.mxu0 0
  %85 = vmatpush2.bf16.msra.mxu0 0
  %86 = vmatprep.subr.bf16.mxu0 0
  %87 = vmatpush2.bf16.msra.mxu0 0
  %88 = vmatprep.subr.bf16.mxu0 0
  %89 = vmatpush2.bf16.msra.mxu0 0
  %90 = vmatprep.subr.bf16.mxu0 0
  %91 = vmatpush2.bf16.msra.mxu0 0
  %92 = vmatprep.mubr.bf16.mxu0 0
  %93 = vmatmul.mubr.bf16.gmra.mxu0 %v58
  %v94 = vpop.f32.mrf.mxu0
  %v95 = vadd.f32 0.0, %v94
  %v96 = vpop.f32.mrf.mxu0
  %v97 = vpop.f32.mrf.mxu0
  %v98 = vadd.f32 0.0, %v97
  %v99 = vpop.f32.mrf.mxu0
  %100 = vdwg.mxu0
  %v101 = vadd.f32 %v31, %v95
  %v102 = vadd.f32 %v32, %v98
  %103 = vst.msk [vmem:[#allocation2] sm:$0xff] %vm56, %v101
  %104 = vst.msk [vmem:[#allocation2 + $0x8] sm:$0xff] %vm56, %v102
  // Predicated region
  $region30: #{bert_classifier_forward.12} parent=0 // pred_check
    %p105 = pneg %p24
  $region31: #{bert_classifier_forward.12} parent=0 // pred_check_branch
    %107 = sbr.rel (%p105) target = $region33
  $region32: #{bert_classifier_forward.12} parent=0 // pred_region
    %v108 = vld [vmem:[#allocation2] sm:$0xff]
    %v109 = vld [vmem:[#allocation2 + $0x8] sm:$0xff]
    %v110 = vld [vmem:[%s2] sm:$0x1]
    %v112 = vlaneseq
    %v113 = vshrl.u32 %v112, 7
    %v114 = vsub.s32 0, %v113
    %v115 = vrot.slane %v110, %v114
    %v117 = vadd.f32 %v108, %v115
    %v118 = vadd.f32 %v109, %v115
    %v119 = vld [vmem:[%s3] sm:$0xf]
    %v120 = vld [vmem:[%s3 + $0x4] sm:$0xf]
    %v121 = vunpack.c.l.bf16 %v119
    %v122 = vunpack.c.l.bf16 %v120
    %v123 = vadd.f32 %v117, %v121
    %v124 = vadd.f32 %v118, %v122
    %v125 = vsel %vm56, %v123, 0.0
    %126 = vadd.xlane.f32.xlu0 %v125
    %v127 = vpop.xlane.xlu0 %126
    %v128 = vsel %vm56, %v124, 0.0
    %129 = vadd.xlane.f32.xlu0 %v128
    %v130 = vpop.xlane.xlu0 %129
    %v131 = vrcp.pop 32.0
    %v132 = vmul.f32 %v127, %v131
    %v133 = vmul.f32 %v130, %v131
    %v134 = vsub.f32 %v123, %v132
    %v135 = vsub.f32 %v124, %v133
    %v136 = vmul.f32 %v134, %v134
    %v137 = vmul.f32 %v135, %v135
    %v138 = vsel %vm56, %v136, 0.0
    %139 = vadd.xlane.f32.xlu0 %v138
    %v140 = vpop.xlane.xlu0 %139
    %v141 = vsel %vm56, %v137, 0.0
    %142 = vadd.xlane.f32.xlu0 %v141
    %v143 = vpop.xlane.xlu0 %142
    %v144 = vmul.f32 %v140, %v131
    %v145 = vmul.f32 %v143, %v131
    %v146 = vadd.f32 %v144, 1e-12
    %v147 = vadd.f32 %v145, 1e-12
    %v148 = vrsqrt.pop %v146
    %v149 = vrsqrt.pop %v147
    %v150 = vmul.f32 %v134, %v148
    %v151 = vmul.f32 %v135, %v149
    %v152 = vld [vmem:[%s4] sm:$0x1]
    %v154 = vlaneseq
    %v155 = vshrl.u32 %v154, 7
    %v156 = vsub.s32 0, %v155
    %v157 = vrot.slane %v152, %v156
    %v159 = vmul.f32 %v150, %v157
    %v160 = vmul.f32 %v151, %v157
    %v161 = vld [vmem:[%s5] sm:$0x1]
    %v163 = vlaneseq
    %v164 = vshrl.u32 %v163, 7
    %v165 = vsub.s32 0, %v164
    %v166 = vrot.slane %v161, %v165
    %v168 = vadd.f32 %v159, %v166
    %v169 = vadd.f32 %v160, %v166
    %v170 = vpack.c.bf16 %v169, %v168
    %v172 = vunpack.c.l.b16 %v170
    %v173 = vunpack.c.h.b16 %v170
    %v174 = vpack.c.b16 %v172, %v172
    %v175 = vpack.c.b16 %v173, %v173
    %vm178 = vcmask 257024
    %179 = vst.msk [vmem:[%s6] sm:$0xf] %vm178, %v174
    %180 = vst.msk [vmem:[%s6 + $0x4] sm:$0xf] %vm178, %v175
  $region33: #{bert_classifier_forward.12} parent=0 // pred_fallthru
    _
  // Predicated region
  $region34: #{bert_classifier_forward.12} parent=0 // pred_check
    _
  $region35: #{bert_classifier_forward.12} parent=0 // pred_check_branch
    %182 = sbr.rel (0) target = $region37
  $region36: #{bert_classifier_forward.12} parent=0 // pred_region
    _
  $region37: #{bert_classifier_forward.12} parent=0 // pred_fallthru
    _
  // Predicated region
  $region38: #{bert_classifier_forward.12} parent=0 // pred_check
    _
  $region39: #{bert_classifier_forward.12} parent=0 // pred_check_branch
    %184 = sbr.rel (0) target = $region41
  $region40: #{bert_classifier_forward.12} parent=0 // pred_region
    _
  $region41: #{bert_classifier_forward.12} parent=0 // pred_fallthru
    _

// kernel: bert_classifier_forward.11
$region0: #{bert_classifier_forward.11}
  #allocation0 [shape = 'u32[]', space=smem, size = 0x4, offset = 0x4, fixed_abs, tag = 'smem constant byte address 0x4 - core index']
  #allocation1 [shape = 'u32[144,128]{1,0:T(1,128)}', space=vmem, size = 0x12000, scoped, tag = 'internal scratch']
  %s0 = inlined_call_operand.vmem [shape: bf16[16,32], index: 0, kind: input, shape index: {}]
  %s1 = inlined_call_operand.vmem [shape: bf16[32,96], index: 1, kind: input, shape index: {}]
  %s2 = inlined_call_operand.vmem [shape: f32[1,96], index: 2, kind: input, shape index: {}]
  %s3 = inlined_call_operand.vmem [shape: f32[2,1,8], index: 3, kind: input, shape index: {}]
  %s4 = inlined_call_operand.vmem [shape: bf16[16,32], index: 4, kind: output, shape index: {}]
  %s5 = sld [smem:[#allocation0]]
  $region49: #{bert_classifier_forward.11} parent=0
    _
  %s7 = ssub.s32 1, %s5
  %s8 = scalar_select 0, %s7, %s5
  loop: start=0, step=1, limit=4
  $region2: #{bert_classifier_forward.11} parent=0 // loop_pre_header
    _
  $region3: #{bert_classifier_forward.11} parent=0 // loop_header
    %s10 = sphi 0, %s14
    %p11 = scmp.ge.s32.totalorder %s10, 4
    %s20 = sphi 0, %s22
    %s23 = sphi 0, %s20
    %s24 = sphi 0, %s23
    %s40 = sphi 0, %s24
    %s44 = sphi 0, %s44
    %s46 = sphi 0, %s44
    %s47 = sphi 0, %s46
    %s61 = sphi 0, %s47
    %s65 = sphi 0, %s65
    %s67 = sphi 0, %s65
    %s68 = sphi 0, %s67
    %s82 = sphi 0, %s68
    %s88 = sphi 0, %s90
    %s91 = sphi 0, %s88
    %s92 = sphi 0, %s91
    %s108 = sphi 0, %s92
    %s114 = sphi 0, %s116
    %s117 = sphi 0, %s114
    %s118 = sphi 0, %s117
    %s134 = sphi 0, %s118
  $region4: #{bert_classifier_forward.11} parent=0 // loop_header_branch
    %13 = sbr.rel (%p11) target = $region8
  $region5: #{bert_classifier_forward.11} parent=0 // loop_body
    %s15 = ssub.s32 %s10, 1
    %s16 = ssub.s32 %s10, 2
    %s17 = sadd.s32 %s10, 1
    %s18 = ssub.s32 %s10, %s17
    %p19 = scmp.eq.s32.totalorder %s18, 0
    %s21 = sadd.s32 %s20, 1
    %s22 = scalar_select %p19, %s20, %s21
    %p25 = pneg %p19
    %p26 = scmp.eq.s32.totalorder %s10, 1
    %p27 = por %p25, %p26
    %p28 = scmp.ne.s32.totalorder %s20, %s23
    %p29 = scmp.eq.s32.totalorder %s10, 0
    %p30 = por %p28, %p29
    %p31 = scmp.ne.s32.totalorder %s20, %s23
    %p32 = scmp.eq.s32.totalorder %s15, 1
    %p33 = por %p31, %p32
    %p34 = scmp.ne.s32.totalorder %s23, %s24
    %p35 = scmp.eq.s32.totalorder %s15, 0
    %p36 = por %p34, %p35
    %p37 = scmp.ne.s32.totalorder %s23, %s24
    %p38 = scmp.eq.s32.totalorder %s16, 1
    %p39 = por %p37, %p38
    %p41 = scmp.ne.s32.totalorder %s24, %s40
    %p42 = scmp.eq.s32.totalorder %s16, 0
    %p43 = por %p41, %p42
    %s45 = sadd.s32 %s44, 1
    %p48 = scmp.eq.s32.totalorder %s10, 1
    %p49 = scmp.ne.s32.totalorder %s44, %s46
    %p50 = scmp.eq.s32.totalorder %s10, 0
    %p51 = por %p49, %p50
    %p52 = scmp.ne.s32.totalorder %s44, %s46
    %p53 = scmp.eq.s32.totalorder %s15, 1
    %p54 = por %p52, %p53
    %p55 = scmp.ne.s32.totalorder %s46, %s47
    %p56 = scmp.eq.s32.totalorder %s15, 0
    %p57 = por %p55, %p56
    %p58 = scmp.ne.s32.totalorder %s46, %s47
    %p59 = scmp.eq.s32.totalorder %s16, 1
    %p60 = por %p58, %p59
    %p62 = scmp.ne.s32.totalorder %s47, %s61
    %p63 = scmp.eq.s32.totalorder %s16, 0
    %p64 = por %p62, %p63
    %s66 = sadd.s32 %s65, 1
    %p69 = scmp.eq.s32.totalorder %s10, 1
    %p70 = scmp.ne.s32.totalorder %s65, %s67
    %p71 = scmp.eq.s32.totalorder %s10, 0
    %p72 = por %p70, %p71
    %p73 = scmp.ne.s32.totalorder %s65, %s67
    %p74 = scmp.eq.s32.totalorder %s15, 1
    %p75 = por %p73, %p74
    %p76 = scmp.ne.s32.totalorder %s67, %s68
    %p77 = scmp.eq.s32.totalorder %s15, 0
    %p78 = por %p76, %p77
    %p79 = scmp.ne.s32.totalorder %s67, %s68
    %p80 = scmp.eq.s32.totalorder %s16, 1
    %p81 = por %p79, %p80
    %p83 = scmp.ne.s32.totalorder %s68, %s82
    %p84 = scmp.eq.s32.totalorder %s16, 0
    %p85 = por %p83, %p84
    %s86 = ssub.s32 %s10, %s17
    %p87 = scmp.eq.s32.totalorder %s86, 0
    %s89 = sadd.s32 %s88, 1
    %s90 = scalar_select %p87, %s88, %s89
    %p93 = pneg %p87
    %p94 = scmp.eq.s32.totalorder %s10, 1
    %p95 = por %p93, %p94
    %p96 = scmp.ne.s32.totalorder %s88, %s91
    %p97 = scmp.eq.s32.totalorder %s10, 0
    %p98 = por %p96, %p97
    %p99 = scmp.ne.s32.totalorder %s88, %s91
    %p100 = scmp.eq.s32.totalorder %s15, 1
    %p101 = por %p99, %p100
    %p102 = scmp.ne.s32.totalorder %s91, %s92
    %p103 = scmp.eq.s32.totalorder %s15, 0
    %p104 = por %p102, %p103
    %p105 = scmp.ne.s32.totalorder %s91, %s92
    %p106 = scmp.eq.s32.totalorder %s16, 1
    %p107 = por %p105, %p106
    %p109 = scmp.ne.s32.totalorder %s92, %s108
    %p110 = scmp.eq.s32.totalorder %s16, 0
    %p111 = por %p109, %p110
    %s112 = ssub.s32 %s10, %s17
    %p113 = scmp.eq.s32.totalorder %s112, 0
    %s115 = sadd.s32 %s114, 1
    %s116 = scalar_select %p113, %s114, %s115
    %p119 = pneg %p113
    %p120 = scmp.eq.s32.totalorder %s10, 1
    %p121 = por %p119, %p120
    %p122 = scmp.ne.s32.totalorder %s114, %s117
    %p123 = scmp.eq.s32.totalorder %s10, 0
    %p124 = por %p122, %p123
    %p125 = scmp.ne.s32.totalorder %s114, %s117
    %p126 = scmp.eq.s32.totalorder %s15, 1
    %p127 = por %p125, %p126
    %p128 = scmp.ne.s32.totalorder %s117, %s118
    %p129 = scmp.eq.s32.totalorder %s15, 0
    %p130 = por %p128, %p129
    %p131 = scmp.ne.s32.totalorder %s117, %s118
    %p132 = scmp.eq.s32.totalorder %s16, 1
    %p133 = por %p131, %p132
    %p135 = scmp.ne.s32.totalorder %s118, %s134
    %p136 = scmp.eq.s32.totalorder %s16, 0
    %p137 = por %p135, %p136
    %p138 = scmp.le.s32.totalorder 1, %s10
    %p139 = scmp.lt.s32.totalorder %s10, 3
    %p140 = pnand %p138, %p139
    %p141 = pneg %p140
    // Predicated region
    $region9: #{bert_classifier_forward.11} parent=5 // pred_check
      _
    $region10: #{bert_classifier_forward.11} parent=5 // pred_check_branch
      %143 = sbr.rel (%p140) target = $region12
    $region11: #{bert_classifier_forward.11} parent=5 // pred_region
      %s144 = ssub.s32 %s10, 1
      // Predicated region
      $region13: #{bert_classifier_forward.11} parent=11 // pred_check
        %p145 = pneg %p57
      $region14: #{bert_classifier_forward.11} parent=11 // pred_check_branch
        %147 = sbr.rel (%p145) target = $region16
      $region15: #{bert_classifier_forward.11} parent=11 // pred_region
        _
      $region16: #{bert_classifier_forward.11} parent=11 // pred_fallthru
        _
      // Predicated region
      $region17: #{bert_classifier_forward.11} parent=11 // pred_check
        %p148 = pneg %p78
      $region18: #{bert_classifier_forward.11} parent=11 // pred_check_branch
        %150 = sbr.rel (%p148) target = $region20
      $region19: #{bert_classifier_forward.11} parent=11 // pred_region
        _
      $region20: #{bert_classifier_forward.11} parent=11 // pred_fallthru
        _
    $region12: #{bert_classifier_forward.11} parent=5 // pred_fallthru
      _
    %p151 = scmp.lt.s32.totalorder %s10, 2
    // Predicated region
    $region21: #{bert_classifier_forward.11} parent=5 // pred_check
      %p152 = pneg %p151
    $region22: #{bert_classifier_forward.11} parent=5 // pred_check_branch
      %154 = sbr.rel (%p152) target = $region24
    $region23: #{bert_classifier_forward.11} parent=5 // pred_region
      // Predicated region
      $region25: #{bert_classifier_forward.11} parent=23 // pred_check
        %p155 = pneg %p30
      $region26: #{bert_classifier_forward.11} parent=23 // pred_check_branch
        %157 = sbr.rel (%p155) target = $region28
      $region27: #{bert_classifier_forward.11} parent=23 // pred_region
        %p158 = scmp.lt.s32.totalorder %s10, 1
        %s159 = scalar_select %p158, %s10, 1
        %s160 = smul.addr %s159, 4
        %s161 = scalar_lea.vmem %s0, %s160
      $region28: #{bert_classifier_forward.11} parent=23 // pred_fallthru
        _
      // Predicated region
      $region29: #{bert_classifier_forward.11} parent=23 // pred_check
        %p162 = pneg %p98
      $region30: #{bert_classifier_forward.11} parent=23 // pred_check_branch
        %164 = sbr.rel (%p162) target = $region32
      $region31: #{bert_classifier_forward.11} parent=23 // pred_region
        %p165 = scmp.lt.s32.totalorder %s10, 1
        %s166 = scalar_select %p165, %s10, 1
        %s167 = scalar_lea.vmem %s3, %s166
      $region32: #{bert_classifier_forward.11} parent=23 // pred_fallthru
        _
    $region24: #{bert_classifier_forward.11} parent=5 // pred_fallthru
      _
    %p168 = scmp.le.s32.totalorder 1, %s10
    %p169 = scmp.lt.s32.totalorder %s10, 3
    %p170 = pnand %p168, %p169
    %p171 = pneg %p170
    // Predicated region
    $region33: #{bert_classifier_forward.11} parent=5 // pred_check
      _
    $region34: #{bert_classifier_forward.11} parent=5 // pred_check_branch
      %173 = sbr.rel (%p170) target = $region36
    $region35: #{bert_classifier_forward.11} parent=5 // pred_region
      %s174 = ssub.s32 %s10, 1
      %p175 = scmp.lt.s32.totalorder %s15, 1
      %s176 = scalar_select %p175, %s15, 1
      %s177 = smul.addr %s176, 4
      %s178 = scalar_lea.vmem %s0, %s177
      %p179 = pneg %p36
      %p180 = pneg %p33
      %p181 = pneg %p57
      %p182 = pneg %p54
      %p183 = pneg %p78
      %p184 = pneg %p75
      %p185 = scmp.lt.s32.totalorder %s15, 1
      %s186 = scalar_select %p185, %s15, 1
      %s187 = scalar_lea.vmem %s3, %s186
      %p188 = pneg %p104
      %p189 = pneg %p101
      %p190 = pneg %p130
      %p191 = pneg %p127
      %p192 = scmp.lt.s32.totalorder %s15, 1
      %s193 = scalar_select %p192, %s15, 1
      %s194 = smul.addr %s193, 4
      %s195 = scalar_lea.vmem %s4, %s194
      %p196 = scmp.lt.s32.totalorder %s15, 1
      %s197 = scalar_select %p196, %s15, 1
      %s198 = smul.addr %s197, 4
      %s199 = scalar_lea.vmem %s0, %s198
      %p200 = scmp.lt.s32.totalorder %s15, 1
      %s201 = scalar_select %p200, %s15, 1
      %s202 = scalar_lea.vmem %s3, %s201
      %p203 = scmp.lt.s32.totalorder %s15, 1
      %s204 = scalar_select %p203, %s15, 1
      %s205 = smul.addr %s204, 4
      %s206 = scalar_lea.vmem %s4, %s205
      %v208 = vld [vmem:[%s199] sm:$0xf]
      %v209 = vld [vmem:[%s1] sm:$0xf]
      %v210 = vld [vmem:[%s1 + $0x4] sm:$0xf]
      %v211 = vld [vmem:[%s1 + $0x8] sm:$0xf]
      %v212 = vld [vmem:[%s1 + $0xc] sm:$0xf]
      %v213 = vld [vmem:[%s2] sm:$0x1]
      %v215 = vlaneseq
      %v216 = vshrl.u32 %v215, 7
      %v217 = vsub.s32 0, %v216
      %v218 = vrot.slane %v213, %v217
      %v224 = vunpack.c.l.b16 %v209
      %v225 = vunpack.c.l.b16 %v210
      %v226 = vunpack.c.l.b16 %v211
      %v227 = vunpack.c.l.b16 %v212
      %v228 = vpack.c.b16 %v225, %v224
      %v229 = vpack.c.b16 %v227, %v226
      %vm232 = vcmask 261120
      %v234 = vsel %vm232, %v208, 0
      %236 = vmatprep.subr.bf16.mxu0 0
      %237 = vmatpush1.bf16.msra.mxu0 0
      %238 = vmatprep.subr.bf16.mxu0 0
      %239 = vmatpush1.bf16.msra.mxu0 0
      %240 = vmatprep.subr.bf16.mxu0 0
      %241 = vmatpush1.bf16.msra.mxu0 0
      %242 = vmatprep.subr.bf16.mxu0 0
      %243 = vmatpush1.bf16.msra.mxu0 0
      %244 = vmatprep.subr.bf16.mxu0 0
      %245 = vmatpush1.bf16.msra.mxu0 0
      %246 = vmatprep.subr.bf16.mxu0 0
      %247 = vmatpush1.bf16.msra.mxu0 0
      %248 = vmatprep.subr.bf16.mxu0 0
      %249 = vmatpush1.bf16.msra.mxu0 %v229
      %250 = vmatprep.subr.bf16.mxu0 0
      %251 = vmatpush1.bf16.msra.mxu0 %v228
      %252 = vmatprep.subr.bf16.mxu0 0
      %253 = vmatpush2.bf16.msra.mxu0 0
      %254 = vmatprep.subr.bf16.mxu0 0
      %255 = vmatpush2.bf16.msra.mxu0 0
      %256 = vmatprep.subr.bf16.mxu0 0
      %257 = vmatpush2.bf16.msra.mxu0 0
      %258 = vmatprep.subr.bf16.mxu0 0
      %259 = vmatpush2.bf16.msra.mxu0 0
      %260 = vmatprep.subr.bf16.mxu0 0
      %261 = vmatpush2.bf16.msra.mxu0 0
      %262 = vmatprep.subr.bf16.mxu0 0
      %263 = vmatpush2.bf16.msra.mxu0 0
      %264 = vmatprep.subr.bf16.mxu0 0
      %265 = vmatpush2.bf16.msra.mxu0 0
      %266 = vmatprep.subr.bf16.mxu0 0
      %267 = vmatpush2.bf16.msra.mxu0 0
      %268 = vmatprep.mubr.bf16.mxu0 0
      %269 = vmatmul.mubr.bf16.gmra.mxu0 %v234
      %v270 = vpop.f32.mrf.mxu0
      %v271 = vadd.f32 %v218, %v270
      %v272 = vpop.f32.mrf.mxu0
      %v273 = vpop.f32.mrf.mxu0
      %v274 = vpop.f32.mrf.mxu0
      %275 = vdwg.mxu0
      %v276 = vpack.c.bf16 %v271, %v271
      %v277 = vld [vmem:[%s202] sm:$0x1]
      %279 = vrot.lane.b32.xlu0 %v276, 96
      %v280 = vpop.permute.xlu0 %279
      %vm281 = vcmask 130048
      %v283 = vsel %vm281, %v276, 0
      %v286 = vsel %vm281, %v280, 0
      %288 = vmatprep.subr.bf16.mxu0 0
      %289 = vmatpush1.bf16.xpose.msra.mxu0 0
      %290 = vmatprep.subr.bf16.mxu0 0
      %291 = vmatpush1.bf16.xpose.msra.mxu0 0
      %292 = vmatprep.subr.bf16.mxu0 0
      %293 = vmatpush1.bf16.xpose.msra.mxu0 0
      %294 = vmatprep.subr.bf16.mxu0 0
      %295 = vmatpush1.bf16.xpose.msra.mxu0 0
      %296 = vmatprep.subr.bf16.mxu0 0
      %297 = vmatpush1.bf16.xpose.msra.mxu0 0
      %298 = vmatprep.subr.bf16.mxu0 0
      %299 = vmatpush1.bf16.xpose.msra.mxu0 0
      %300 = vmatprep.subr.bf16.mxu0 0
      %301 = vmatpush1.bf16.xpose.msra.mxu0 0
      %302 = vmatprep.subr.bf16.mxu0 0
      %303 = vmatpush1.bf16.xpose.msra.mxu0 %v286
      %304 = vmatprep.subr.bf16.mxu0 0
      %305 = vmatpush2.bf16.xpose.msra.mxu0 0
      %306 = vmatprep.subr.bf16.mxu0 0
      %307 = vmatpush2.bf16.xpose.msra.mxu0 0
      %308 = vmatprep.subr.bf16.mxu0 0
      %309 = vmatpush2.bf16.xpose.msra.mxu0 0
      %310 = vmatprep.subr.bf16.mxu0 0
      %311 = vmatpush2.bf16.xpose.msra.mxu0 0
      %312 = vmatprep.subr.bf16.mxu0 0
      %313 = vmatpush2.bf16.xpose.msra.mxu0 0
      %314 = vmatprep.subr.bf16.mxu0 0
      %315 = vmatpush2.bf16.xpose.msra.mxu0 0
      %316 = vmatprep.subr.bf16.mxu0 0
      %317 = vmatpush2.bf16.xpose.msra.mxu0 0
      %318 = vmatprep.subr.bf16.mxu0 0
      %319 = vmatpush2.bf16.xpose.msra.mxu0 0
      %320 = vmatprep.mubr.bf16.mxu0 0
      %321 = vmatmul.mubr.bf16.gmra.mxu0 %v283
      %v322 = vpop.f32.mrf.mxu0
      %v323 = vadd.f32 0.0, %v322
      %v324 = vpop.f32.mrf.mxu0
      %v325 = vpop.f32.mrf.mxu0
      %v326 = vpop.f32.mrf.mxu0
      %327 = vdwg.mxu0
      %v328 = vmul.f32 %v323, 0.25
      %v330 = vlaneseq
      %v331 = vshrl.u32 %v330, 7
      %v332 = vsub.s32 0, %v331
      %v333 = vrot.slane %v277, %v332
      %v335 = vadd.f32 %v328, %v333
      %vm336 = vcmask 64512
      %v337 = vsel %vm336, %v335, -inf
      %338 = vmax.xlane.f32.xlu0 %v337
      %v339 = vpop.xlane.xlu0 %338
      %v340 = vsub.f32 %v335, %v339
      %v341 = vmul.f32 %v340, 1.442695
      %v342 = vpow.pop %v341
      %v343 = vsel %vm336, %v342, 0.0
      %344 = vadd.xlane.f32.xlu0 %v343
      %v345 = vpop.xlane.xlu0 %344
      %v346 = vrcp.pop %v345
      %v347 = vmul.f32 %v342, %v346
      %v348 = vpack.c.bf16 %v347, %v347
      %349 = vrot.lane.b32.xlu0 %v276, 64
      %v350 = vpop.permute.xlu0 %349
      %v352 = vsel %vm336, %v348, 0
      %vm354 = vcmask 1043456
      %v356 = vsel %vm354, %v350, 0
      %358 = vmatprep.subr.bf16.mxu0 0
      %359 = vmatpush1.bf16.msra.mxu0 0
      %360 = vmatprep.subr.bf16.mxu0 0
      %361 = vmatpush1.bf16.msra.mxu0 0
      %362 = vmatprep.subr.bf16.mxu0 0
      %363 = vmatpush1.bf16.msra.mxu0 0
      %364 = vmatprep.subr.bf16.mxu0 0
      %365 = vmatpush1.bf16.msra.mxu0 0
      %366 = vmatprep.subr.bf16.mxu0 0
      %367 = vmatpush1.bf16.msra.mxu0 0
      %368 = vmatprep.subr.bf16.mxu0 0
      %369 = vmatpush1.bf16.msra.mxu0 0
      %370 = vmatprep.subr.bf16.mxu0 0
      %371 = vmatpush1.bf16.msra.mxu0 0
      %372 = vmatprep.subr.bf16.mxu0 0
      %373 = vmatpush1.bf16.msra.mxu0 %v356
      %374 = vmatprep.subr.bf16.mxu0 0
      %375 = vmatpush2.bf16.msra.mxu0 0
      %376 = vmatprep.subr.bf16.mxu0 0
      %377 = vmatpush2.bf16.msra.mxu0 0
      %378 = vmatprep.subr.bf16.mxu0 0
      %379 = vmatpush2.bf16.msra.mxu0 0
      %380 = vmatprep.subr.bf16.mxu0 0
      %381 = vmatpush2.bf16.msra.mxu0 0
      %382 = vmatprep.subr.bf16.mxu0 0
      %383 = vmatpush2.bf16.msra.mxu0 0
      %384 = vmatprep.subr.bf16.mxu0 0
      %385 = vmatpush2.bf16.msra.mxu0 0
      %386 = vmatprep.subr.bf16.mxu0 0
      %387 = vmatpush2.bf16.msra.mxu0 0
      %388 = vmatprep.subr.bf16.mxu0 0
      %389 = vmatpush2.bf16.msra.mxu0 0
      %390 = vmatprep.mubr.bf16.mxu0 0
      %391 = vmatmul.mubr.bf16.gmra.mxu0 %v352
      %v392 = vpop.f32.mrf.mxu0
      %v393 = vadd.f32 0.0, %v392
      %v394 = vpop.f32.mrf.mxu0
      %v395 = vpop.f32.mrf.mxu0
      %v396 = vpop.f32.mrf.mxu0
      %397 = vdwg.mxu0
      %v398 = vpack.c.bf16 %v393, %v393
      %vm399 = vcmask 125952
      %400 = vst.msk [vmem:[%s206] sm:$0xf] %vm399, %v398
      %401 = vrot.lane.b32.xlu0 %v276, 112
      %v402 = vpop.permute.xlu0 %401
      %403 = vrot.lane.b32.xlu0 %v276, 80
      %v404 = vpop.permute.xlu0 %403
      %v406 = vsel %vm281, %v402, 0
      %v409 = vsel %vm281, %v404, 0
      %411 = vmatprep.subr.bf16.mxu0 0
      %412 = vmatpush1.bf16.xpose.msra.mxu0 0
      %413 = vmatprep.subr.bf16.mxu0 0
      %414 = vmatpush1.bf16.xpose.msra.mxu0 0
      %415 = vmatprep.subr.bf16.mxu0 0
      %416 = vmatpush1.bf16.xpose.msra.mxu0 0
      %417 = vmatprep.subr.bf16.mxu0 0
      %418 = vmatpush1.bf16.xpose.msra.mxu0 0
      %419 = vmatprep.subr.bf16.mxu0 0
      %420 = vmatpush1.bf16.xpose.msra.mxu0 0
      %421 = vmatprep.subr.bf16.mxu0 0
      %422 = vmatpush1.bf16.xpose.msra.mxu0 0
      %423 = vmatprep.subr.bf16.mxu0 0
      %424 = vmatpush1.bf16.xpose.msra.mxu0 0
      %425 = vmatprep.subr.bf16.mxu0 0
      %426 = vmatpush1.bf16.xpose.msra.mxu0 %v409
      %427 = vmatprep.subr.bf16.mxu0 0
      %428 = vmatpush2.bf16.xpose.msra.mxu0 0
      %429 = vmatprep.subr.bf16.mxu0 0
      %430 = vmatpush2.bf16.xpose.msra.mxu0 0
      %431 = vmatprep.subr.bf16.mxu0 0
      %432 = vmatpush2.bf16.xpose.msra.mxu0 0
      %433 = vmatprep.subr.bf16.mxu0 0
      %434 = vmatpush2.bf16.xpose.msra.mxu0 0
      %435 = vmatprep.subr.bf16.mxu0 0
      %436 = vmatpush2.bf16.xpose.msra.mxu0 0
      %437 = vmatprep.subr.bf16.mxu0 0
      %438 = vmatpush2.bf16.xpose.msra.mxu0 0
      %439 = vmatprep.subr.bf16.mxu0 0
      %440 = vmatpush2.bf16.xpose.msra.mxu0 0
      %441 = vmatprep.subr.bf16.mxu0 0
      %442 = vmatpush2.bf16.xpose.msra.mxu0 0
      %443 = vmatprep.mubr.bf16.mxu0 0
      %444 = vmatmul.mubr.bf16.gmra.mxu0 %v406
      %v445 = vpop.f32.mrf.mxu0
      %v446 = vadd.f32 0.0, %v445
      %v447 = vpop.f32.mrf.mxu0
      %v448 = vpop.f32.mrf.mxu0
      %v449 = vpop.f32.mrf.mxu0
      %450 = vdwg.mxu0
      %v451 = vmul.f32 %v446, 0.25
      %v452 = vadd.f32 %v451, %v333
      %v453 = vsel %vm336, %v452, -inf
      %454 = vmax.xlane.f32.xlu0 %v453
      %v455 = vpop.xlane.xlu0 %454
      %v456 = vsub.f32 %v452, %v455
      %v457 = vmul.f32 %v456, 1.442695
      %v458 = vpow.pop %v457
      %v459 = vsel %vm336, %v458, 0.0
      %460 = vadd.xlane.f32.xlu0 %v459
      %v461 = vpop.xlane.xlu0 %460
      %v462 = vrcp.pop %v461
      %v463 = vmul.f32 %v458, %v462
      %v464 = vpack.c.bf16 %v463, %v463
      %465 = vrot.lane.b32.xlu0 %v276, 48
      %v466 = vpop.permute.xlu0 %465
      %v468 = vsel %vm336, %v464, 0
      %v471 = vsel %vm354, %v466, 0
      %473 = vmatprep.subr.bf16.mxu0 0
      %474 = vmatpush1.bf16.msra.mxu0 0
      %475 = vmatprep.subr.bf16.mxu0 0
      %476 = vmatpush1.bf16.msra.mxu0 0
      %477 = vmatprep.subr.bf16.mxu0 0
      %478 = vmatpush1.bf16.msra.mxu0 0
      %479 = vmatprep.subr.bf16.mxu0 0
      %480 = vmatpush1.bf16.msra.mxu0 0
      %481 = vmatprep.subr.bf16.mxu0 0
      %482 = vmatpush1.bf16.msra.mxu0 0
      %483 = vmatprep.subr.bf16.mxu0 0
      %484 = vmatpush1.bf16.msra.mxu0 0
      %485 = vmatprep.subr.bf16.mxu0 0
      %486 = vmatpush1.bf16.msra.mxu0 0
      %487 = vmatprep.subr.bf16.mxu0 0
      %488 = vmatpush1.bf16.msra.mxu0 %v471
      %489 = vmatprep.subr.bf16.mxu0 0
      %490 = vmatpush2.bf16.msra.mxu0 0
      %491 = vmatprep.subr.bf16.mxu0 0
      %492 = vmatpush2.bf16.msra.mxu0 0
      %493 = vmatprep.subr.bf16.mxu0 0
      %494 = vmatpush2.bf16.msra.mxu0 0
      %495 = vmatprep.subr.bf16.mxu0 0
      %496 = vmatpush2.bf16.msra.mxu0 0
      %497 = vmatprep.subr.bf16.mxu0 0
      %498 = vmatpush2.bf16.msra.mxu0 0
      %499 = vmatprep.subr.bf16.mxu0 0
      %500 = vmatpush2.bf16.msra.mxu0 0
      %501 = vmatprep.subr.bf16.mxu0 0
      %502 = vmatpush2.bf16.msra.mxu0 0
      %503 = vmatprep.subr.bf16.mxu0 0
      %504 = vmatpush2.bf16.msra.mxu0 0
      %505 = vmatprep.mubr.bf16.mxu0 0
      %506 = vmatmul.mubr.bf16.gmra.mxu0 %v468
      %v507 = vpop.f32.mrf.mxu0
      %v508 = vadd.f32 0.0, %v507
      %v509 = vpop.f32.mrf.mxu0
      %v510 = vpop.f32.mrf.mxu0
      %v511 = vpop.f32.mrf.mxu0
      %512 = vdwg.mxu0
      %v513 = vpack.c.bf16 %v508, %v508
      %v515 = vunpack.c.l.b16 %v513
      %v516 = vpack.c.b16 %v515, %v515
      %517 = vrot.lane.b32.xlu0 %v516, 16
      %v518 = vpop.permute.xlu0 %517
      %vm520 = vcmask 257152
      %521 = vst.msk [vmem:[%s206] sm:$0xf] %vm520, %v518
      %p522 = scmp.lt.s32.totalorder %s15, 1
      %s523 = scalar_select %p522, %s15, 1
      %s524 = smul.addr %s523, 4
      %s525 = scalar_lea.vmem %s4, %s524
      // Predicated region
      $region37: #{bert_classifier_forward.11} parent=35 // pred_check
        %p526 = pneg %p127
      $region38: #{bert_classifier_forward.11} parent=35 // pred_check_branch
        %528 = sbr.rel (%p526) target = $region40
      $region39: #{bert_classifier_forward.11} parent=35 // pred_region
        _
      $region40: #{bert_classifier_forward.11} parent=35 // pred_fallthru
        _
    $region36: #{bert_classifier_forward.11} parent=5 // pred_fallthru
      _
    %p529 = scmp.le.s32.totalorder 2, %s10
    // Predicated region
    $region41: #{bert_classifier_forward.11} parent=5 // pred_check
      %p530 = pneg %p529
    $region42: #{bert_classifier_forward.11} parent=5 // pred_check_branch
      %532 = sbr.rel (%p530) target = $region44
    $region43: #{bert_classifier_forward.11} parent=5 // pred_region
      %s533 = ssub.s32 %s10, 2
      // Predicated region
      $region45: #{bert_classifier_forward.11} parent=43 // pred_check
        %p534 = pneg %p133
      $region46: #{bert_classifier_forward.11} parent=43 // pred_check_branch
        %536 = sbr.rel (%p534) target = $region48
      $region47: #{bert_classifier_forward.11} parent=43 // pred_region
        %p537 = scmp.lt.s32.totalorder %s16, 1
        %s538 = scalar_select %p537, %s16, 1
        %s539 = smul.addr %s538, 4
        %s540 = scalar_lea.vmem %s4, %s539
      $region48: #{bert_classifier_forward.11} parent=43 // pred_fallthru
        _
    $region44: #{bert_classifier_forward.11} parent=5 // pred_fallthru
      _
  $region6: #{bert_classifier_forward.11} parent=0 // loop_footer
    %s14 = sadd.s32 1, %s10
  $region7: #{bert_classifier_forward.11} parent=0 // loop_footer_branch
    %9 = sbr.rel target = $region3
  $region8: #{bert_classifier_forward.11} parent=0 // loop_exit
    _

// kernel: bert_classifier_forward.19
$region0: #{bert_classifier_forward.19}
  #allocation0 [shape = 'u32[]', space=smem, size = 0x4, offset = 0x4, fixed_abs, tag = 'smem constant byte address 0x4 - core index']
  #allocation1 [shape = 'u32[144,128]{1,0:T(1,128)}', space=vmem, size = 0x12000, scoped, tag = 'internal scratch']
  #allocation2 [shape = 'f32[1,1]{1,0:T(1,128)S(1)}', space=vmem, size = 0x200, scoped, tag = 'scoped memory for bert_classifier_forward.19']
  %s0 = inlined_call_operand.vmem [shape: bf16[2,32], index: 0, kind: input, shape index: {}]
  %s1 = inlined_call_operand.vmem [shape: bf16[32,32], index: 1, kind: input, shape index: {}]
  %s2 = inlined_call_operand.vmem [shape: f32[1,32], index: 2, kind: input, shape index: {}]
  %s3 = inlined_call_operand.vmem [shape: bf16[32,1], index: 3, kind: input, shape index: {}]
  %s4 = inlined_call_operand.<no memory space> [shape: f32[1,1], index: 4, kind: input, shape index: {}]
  %s5 = inlined_call_operand.vmem [shape: f32[2,1], index: 5, kind: output, shape index: {}]
  %s6 = sld [smem:[#allocation0]]
  $region30: #{bert_classifier_forward.19} parent=0
    _
  %s8 = ssub.s32 1, %s6
  %s9 = scalar_select 0, %s8, %s6
  %v10 = vstv %s4
  %11 = vst [vmem:[#allocation2] sm:$0x1] %v10
  // Predicated region
  $region2: #{bert_classifier_forward.19} parent=0 // pred_check
    _
  $region3: #{bert_classifier_forward.19} parent=0 // pred_check_branch
    %13 = sbr.rel (0) target = $region5
  $region4: #{bert_classifier_forward.19} parent=0 // pred_region
    _
  $region5: #{bert_classifier_forward.19} parent=0 // pred_fallthru
    _
  // Predicated region
  $region6: #{bert_classifier_forward.19} parent=0 // pred_check
    _
  $region7: #{bert_classifier_forward.19} parent=0 // pred_check_branch
    %15 = sbr.rel (0) target = $region9
  $region8: #{bert_classifier_forward.19} parent=0 // pred_region
    _
  $region9: #{bert_classifier_forward.19} parent=0 // pred_fallthru
    _
  // Predicated region
  $region10: #{bert_classifier_forward.19} parent=0 // pred_check
    _
  $region11: #{bert_classifier_forward.19} parent=0 // pred_check_branch
    %17 = sbr.rel (0) target = $region13
  $region12: #{bert_classifier_forward.19} parent=0 // pred_region
    _
  $region13: #{bert_classifier_forward.19} parent=0 // pred_fallthru
    _
  // Predicated region
  $region14: #{bert_classifier_forward.19} parent=0 // pred_check
    _
  $region15: #{bert_classifier_forward.19} parent=0 // pred_check_branch
    %19 = sbr.rel (0) target = $region17
  $region16: #{bert_classifier_forward.19} parent=0 // pred_region
    _
  $region17: #{bert_classifier_forward.19} parent=0 // pred_fallthru
    _
  // Predicated region
  $region18: #{bert_classifier_forward.19} parent=0 // pred_check
    _
  $region19: #{bert_classifier_forward.19} parent=0 // pred_check_branch
    %21 = sbr.rel (0) target = $region21
  $region20: #{bert_classifier_forward.19} parent=0 // pred_region
    _
  $region21: #{bert_classifier_forward.19} parent=0 // pred_fallthru
    _
  %v23 = vld [vmem:[%s0] sm:$0x1]
  %v24 = vld [vmem:[%s1] sm:$0xf]
  %v25 = vld [vmem:[%s1 + $0x4] sm:$0xf]
  %v26 = vld [vmem:[%s1 + $0x8] sm:$0xf]
  %v27 = vld [vmem:[%s1 + $0xc] sm:$0xf]
  %v28 = vld [vmem:[%s2] sm:$0x1]
  %v30 = vlaneseq
  %v31 = vshrl.u32 %v30, 7
  %v32 = vsub.s32 0, %v31
  %v33 = vrot.slane %v28, %v32
  %v39 = vunpack.c.l.b16 %v24
  %v40 = vunpack.c.l.b16 %v25
  %v41 = vunpack.c.l.b16 %v26
  %v42 = vunpack.c.l.b16 %v27
  %v43 = vpack.c.b16 %v40, %v39
  %v44 = vpack.c.b16 %v42, %v41
  %vm47 = vcmask 261120
  %v49 = vsel %vm47, %v23, 0
  %51 = vmatprep.subr.bf16.mxu0 0
  %52 = vmatpush1.bf16.msra.mxu0 0
  %53 = vmatprep.subr.bf16.mxu0 0
  %54 = vmatpush1.bf16.msra.mxu0 0
  %55 = vmatprep.subr.bf16.mxu0 0
  %56 = vmatpush1.bf16.msra.mxu0 0
  %57 = vmatprep.subr.bf16.mxu0 0
  %58 = vmatpush1.bf16.msra.mxu0 0
  %59 = vmatprep.subr.bf16.mxu0 0
  %60 = vmatpush1.bf16.msra.mxu0 0
  %61 = vmatprep.subr.bf16.mxu0 0
  %62 = vmatpush1.bf16.msra.mxu0 0
  %63 = vmatprep.subr.bf16.mxu0 0
  %64 = vmatpush1.bf16.msra.mxu0 %v44
  %65 = vmatprep.subr.bf16.mxu0 0
  %66 = vmatpush1.bf16.msra.mxu0 %v43
  %67 = vmatprep.subr.bf16.mxu0 0
  %68 = vmatpush2.bf16.msra.mxu0 0
  %69 = vmatprep.subr.bf16.mxu0 0
  %70 = vmatpush2.bf16.msra.mxu0 0
  %71 = vmatprep.subr.bf16.mxu0 0
  %72 = vmatpush2.bf16.msra.mxu0 0
  %73 = vmatprep.subr.bf16.mxu0 0
  %74 = vmatpush2.bf16.msra.mxu0 0
  %75 = vmatprep.subr.bf16.mxu0 0
  %76 = vmatpush2.bf16.msra.mxu0 0
  %77 = vmatprep.subr.bf16.mxu0 0
  %78 = vmatpush2.bf16.msra.mxu0 0
  %79 = vmatprep.subr.bf16.mxu0 0
  %80 = vmatpush2.bf16.msra.mxu0 0
  %81 = vmatprep.subr.bf16.mxu0 0
  %82 = vmatpush2.bf16.msra.mxu0 0
  %83 = vmatprep.mubr.bf16.mxu0 0
  %84 = vmatmul.mubr.bf16.gmra.mxu0 %v49
  %v85 = vpop.f32.mrf.mxu0
  %v86 = vadd.f32 %v33, %v85
  %v87 = vpop.f32.mrf.mxu0
  %v88 = vpop.f32.mrf.mxu0
  %v89 = vpop.f32.mrf.mxu0
  %90 = vdwg.mxu0
  %v91 = vtanh.pop %v86
  %v92 = vpack.c.bf16 %v91, %v91
  %v93 = vld [vmem:[%s3] sm:$0xf]
  %v94 = vld [vmem:[%s3 + $0x4] sm:$0xf]
  %v95 = vld [vmem:[%s3 + $0x8] sm:$0xf]
  %v96 = vld [vmem:[%s3 + $0xc] sm:$0xf]
  %v97 = vld [vmem:[#allocation2] sm:$0x1]
  %v99 = vlaneseq
  %v100 = vshrl.u32 %v99, 7
  %v101 = vsub.s32 0, %v100
  %v102 = vrot.slane %v97, %v101
  %v108 = vunpack.c.l.b16 %v93
  %v109 = vunpack.c.l.b16 %v94
  %v110 = vunpack.c.l.b16 %v95
  %v111 = vunpack.c.l.b16 %v96
  %v112 = vpack.c.b16 %v109, %v108
  %v113 = vpack.c.b16 %v111, %v110
  %v117 = vsel %vm47, %v92, 0
  %119 = vmatprep.subr.bf16.mxu0 0
  %120 = vmatpush1.bf16.msra.mxu0 0
  %121 = vmatprep.subr.bf16.mxu0 0
  %122 = vmatpush1.bf16.msra.mxu0 0
  %123 = vmatprep.subr.bf16.mxu0 0
  %124 = vmatpush1.bf16.msra.mxu0 0
  %125 = vmatprep.subr.bf16.mxu0 0
  %126 = vmatpush1.bf16.msra.mxu0 0
  %127 = vmatprep.subr.bf16.mxu0 0
  %128 = vmatpush1.bf16.msra.mxu0 0
  %129 = vmatprep.subr.bf16.mxu0 0
  %130 = vmatpush1.bf16.msra.mxu0 0
  %131 = vmatprep.subr.bf16.mxu0 0
  %132 = vmatpush1.bf16.msra.mxu0 %v113
  %133 = vmatprep.subr.bf16.mxu0 0
  %134 = vmatpush1.bf16.msra.mxu0 %v112
  %135 = vmatprep.subr.bf16.mxu0 0
  %136 = vmatpush2.bf16.msra.mxu0 0
  %137 = vmatprep.subr.bf16.mxu0 0
  %138 = vmatpush2.bf16.msra.mxu0 0
  %139 = vmatprep.subr.bf16.mxu0 0
  %140 = vmatpush2.bf16.msra.mxu0 0
  %141 = vmatprep.subr.bf16.mxu0 0
  %142 = vmatpush2.bf16.msra.mxu0 0
  %143 = vmatprep.subr.bf16.mxu0 0
  %144 = vmatpush2.bf16.msra.mxu0 0
  %145 = vmatprep.subr.bf16.mxu0 0
  %146 = vmatpush2.bf16.msra.mxu0 0
  %147 = vmatprep.subr.bf16.mxu0 0
  %148 = vmatpush2.bf16.msra.mxu0 0
  %149 = vmatprep.subr.bf16.mxu0 0
  %150 = vmatpush2.bf16.msra.mxu0 0
  %151 = vmatprep.mubr.bf16.mxu0 0
  %152 = vmatmul.mubr.bf16.gmra.mxu0 %v117
  %v153 = vpop.f32.mrf.mxu0
  %v154 = vadd.f32 %v102, %v153
  %v155 = vpop.f32.mrf.mxu0
  %v156 = vpop.f32.mrf.mxu0
  %v157 = vpop.f32.mrf.mxu0
  %158 = vdwg.mxu0
  %vm159 = vcmask 1024
  %160 = vst.msk [vmem:[%s5] sm:$0x3] %vm159, %v154
  // Predicated region
  $region22: #{bert_classifier_forward.19} parent=0 // pred_check
    _
  $region23: #{bert_classifier_forward.19} parent=0 // pred_check_branch
    %162 = sbr.rel (0) target = $region25
  $region24: #{bert_classifier_forward.19} parent=0 // pred_region
    _
  $region25: #{bert_classifier_forward.19} parent=0 // pred_fallthru
    _
  // Predicated region
  $region26: #{bert_classifier_forward.19} parent=0 // pred_check
    _
  $region27: #{bert_classifier_forward.19} parent=0 // pred_check_branch
    %164 = sbr.rel (0) target = $region29
  $region28: #{bert_classifier_forward.19} parent=0 // pred_region
    _
  $region29: #{bert_classifier_forward.19} parent=0 // pred_fallthru
    _

// kernel: bert_classifier_forward.14
$region0: #{bert_classifier_forward.14}
  #allocation0 [shape = 'u32[]', space=smem, size = 0x4, offset = 0x4, fixed_abs, tag = 'smem constant byte address 0x4 - core index']
  #allocation1 [shape = 'u32[144,128]{1,0:T(1,128)}', space=vmem, size = 0x12000, scoped, tag = 'internal scratch']
  #allocation2 [shape = 'f32[16,32]{1,0:T(8,128)}', space=vmem, size = 0x2000, scoped, tag = 'scratch operand']
  %s0 = inlined_call_operand.vmem [shape: bf16[16,64], index: 0, kind: input, shape index: {}]
  %s1 = inlined_call_operand.vmem [shape: bf16[64,32], index: 1, kind: input, shape index: {}]
  %s2 = inlined_call_operand.vmem [shape: f32[1,32], index: 2, kind: input, shape index: {}]
  %s3 = inlined_call_operand.vmem [shape: bf16[16,32], index: 3, kind: input, shape index: {}]
  %s4 = inlined_call_operand.vmem [shape: f32[1,32], index: 4, kind: input, shape index: {}]
  %s5 = inlined_call_operand.vmem [shape: f32[1,32], index: 5, kind: input, shape index: {}]
  %s6 = inlined_call_operand.vmem [shape: bf16[16,32], index: 6, kind: output, shape index: {}]
  %s7 = sld [smem:[#allocation0]]
  $region42: #{bert_classifier_forward.14} parent=0
    _
  %s9 = ssub.s32 1, %s7
  %s10 = scalar_select 0, %s9, %s7
  // Predicated region
  $region2: #{bert_classifier_forward.14} parent=0 // pred_check
    _
  $region3: #{bert_classifier_forward.14} parent=0 // pred_check_branch
    %12 = sbr.rel (0) target = $region5
  $region4: #{bert_classifier_forward.14} parent=0 // pred_region
    _
  $region5: #{bert_classifier_forward.14} parent=0 // pred_fallthru
    _
  // Predicated region
  $region6: #{bert_classifier_forward.14} parent=0 // pred_check
    _
  $region7: #{bert_classifier_forward.14} parent=0 // pred_check_branch
    %14 = sbr.rel (0) target = $region9
  $region8: #{bert_classifier_forward.14} parent=0 // pred_region
    _
  $region9: #{bert_classifier_forward.14} parent=0 // pred_fallthru
    _
  // Predicated region
  $region10: #{bert_classifier_forward.14} parent=0 // pred_check
    _
  $region11: #{bert_classifier_forward.14} parent=0 // pred_check_branch
    %16 = sbr.rel (0) target = $region13
  $region12: #{bert_classifier_forward.14} parent=0 // pred_region
    _
  $region13: #{bert_classifier_forward.14} parent=0 // pred_fallthru
    _
  // Predicated region
  $region14: #{bert_classifier_forward.14} parent=0 // pred_check
    _
  $region15: #{bert_classifier_forward.14} parent=0 // pred_check_branch
    %18 = sbr.rel (0) target = $region17
  $region16: #{bert_classifier_forward.14} parent=0 // pred_region
    _
  $region17: #{bert_classifier_forward.14} parent=0 // pred_fallthru
    _
  // Predicated region
  $region18: #{bert_classifier_forward.14} parent=0 // pred_check
    _
  $region19: #{bert_classifier_forward.14} parent=0 // pred_check_branch
    %20 = sbr.rel (0) target = $region21
  $region20: #{bert_classifier_forward.14} parent=0 // pred_region
    _
  $region21: #{bert_classifier_forward.14} parent=0 // pred_fallthru
    _
  // Predicated region
  $region22: #{bert_classifier_forward.14} parent=0 // pred_check
    _
  $region23: #{bert_classifier_forward.14} parent=0 // pred_check_branch
    %22 = sbr.rel (0) target = $region25
  $region24: #{bert_classifier_forward.14} parent=0 // pred_region
    _
  $region25: #{bert_classifier_forward.14} parent=0 // pred_fallthru
    _
  %p24 = scmp.eq.s32.totalorder 0, 0
  // Predicated region
  $region26: #{bert_classifier_forward.14} parent=0 // pred_check
    %p25 = pneg %p24
  $region27: #{bert_classifier_forward.14} parent=0 // pred_check_branch
    %27 = sbr.rel (%p25) target = $region29
  $region28: #{bert_classifier_forward.14} parent=0 // pred_region
    %vm28 = vcmask 261120
    %29 = vst.msk [vmem:[#allocation2] sm:$0xff] %vm28, 0.0
    %30 = vst.msk [vmem:[#allocation2 + $0x8] sm:$0xff] %vm28, 0.0
  $region29: #{bert_classifier_forward.14} parent=0 // pred_fallthru
    _
  %v31 = vld [vmem:[#allocation2] sm:$0xff]
  %v32 = vld [vmem:[#allocation2 + $0x8] sm:$0xff]
  %v33 = vld [vmem:[%s0] sm:$0xf]
  %v34 = vld [vmem:[%s0 + $0x4] sm:$0xf]
  %v35 = vld [vmem:[%s1] sm:$0xf]
  %v36 = vld [vmem:[%s1 + $0x4] sm:$0xf]
  %v37 = vld [vmem:[%s1 + $0x8] sm:$0xf]
  %v38 = vld [vmem:[%s1 + $0xc] sm:$0xf]
  %v39 = vld [vmem:[%s1 + $0x10] sm:$0xf]
  %v40 = vld [vmem:[%s1 + $0x14] sm:$0xf]
  %v41 = vld [vmem:[%s1 + $0x18] sm:$0xf]
  %v42 = vld [vmem:[%s1 + $0x1c] sm:$0xf]
  %v45 = vunpack.c.l.b16 %v33
  %v46 = vunpack.c.l.b16 %v34
  %v47 = vpack.c.b16 %v46, %v45
  %v56 = vunpack.c.l.b16 %v35
  %v57 = vunpack.c.l.b16 %v36
  %v58 = vunpack.c.l.b16 %v37
  %v59 = vunpack.c.l.b16 %v38
  %v60 = vunpack.c.l.b16 %v39
  %v61 = vunpack.c.l.b16 %v40
  %v62 = vunpack.c.l.b16 %v41
  %v63 = vunpack.c.l.b16 %v42
  %v64 = vpack.c.b16 %v57, %v56
  %v65 = vpack.c.b16 %v59, %v58
  %v66 = vpack.c.b16 %v61, %v60
  %v67 = vpack.c.b16 %v63, %v62
  %vm72 = vcmask 523264
  %v74 = vsel %vm72, %v47, 0
  %76 = vmatprep.subr.bf16.mxu0 0
  %77 = vmatpush1.bf16.msra.mxu0 0
  %78 = vmatprep.subr.bf16.mxu0 0
  %79 = vmatpush1.bf16.msra.mxu0 0
  %80 = vmatprep.subr.bf16.mxu0 0
  %81 = vmatpush1.bf16.msra.mxu0 0
  %82 = vmatprep.subr.bf16.mxu0 0
  %83 = vmatpush1.bf16.msra.mxu0 0
  %84 = vmatprep.subr.bf16.mxu0 0
  %85 = vmatpush1.bf16.msra.mxu0 %v67
  %86 = vmatprep.subr.bf16.mxu0 0
  %87 = vmatpush1.bf16.msra.mxu0 %v66
  %88 = vmatprep.subr.bf16.mxu0 0
  %89 = vmatpush1.bf16.msra.mxu0 %v65
  %90 = vmatprep.subr.bf16.mxu0 0
  %91 = vmatpush1.bf16.msra.mxu0 %v64
  %92 = vmatprep.subr.bf16.mxu0 0
  %93 = vmatpush2.bf16.msra.mxu0 0
  %94 = vmatprep.subr.bf16.mxu0 0
  %95 = vmatpush2.bf16.msra.mxu0 0
  %96 = vmatprep.subr.bf16.mxu0 0
  %97 = vmatpush2.bf16.msra.mxu0 0
  %98 = vmatprep.subr.bf16.mxu0 0
  %99 = vmatpush2.bf16.msra.mxu0 0
  %100 = vmatprep.subr.bf16.mxu0 0
  %101 = vmatpush2.bf16.msra.mxu0 0
  %102 = vmatprep.subr.bf16.mxu0 0
  %103 = vmatpush2.bf16.msra.mxu0 0
  %104 = vmatprep.subr.bf16.mxu0 0
  %105 = vmatpush2.bf16.msra.mxu0 0
  %106 = vmatprep.subr.bf16.mxu0 0
  %107 = vmatpush2.bf16.msra.mxu0 0
  %108 = vmatprep.mubr.bf16.mxu0 0
  %109 = vmatmul.mubr.bf16.gmra.mxu0 %v74
  %v110 = vpop.f32.mrf.mxu0
  %v111 = vadd.f32 0.0, %v110
  %v112 = vpop.f32.mrf.mxu0
  %v113 = vpop.f32.mrf.mxu0
  %v114 = vadd.f32 0.0, %v113
  %v115 = vpop.f32.mrf.mxu0
  %116 = vdwg.mxu0
  %v117 = vadd.f32 %v31, %v111
  %v118 = vadd.f32 %v32, %v114
  %vm119 = vcmask 261120
  %120 = vst.msk [vmem:[#allocation2] sm:$0xff] %vm119, %v117
  %121 = vst.msk [vmem:[#allocation2 + $0x8] sm:$0xff] %vm119, %v118
  // Predicated region
  $region30: #{bert_classifier_forward.14} parent=0 // pred_check
    %p122 = pneg %p24
  $region31: #{bert_classifier_forward.14} parent=0 // pred_check_branch
    %124 = sbr.rel (%p122) target = $region33
  $region32: #{bert_classifier_forward.14} parent=0 // pred_region
    %v125 = vld [vmem:[#allocation2] sm:$0xff]
    %v126 = vld [vmem:[#allocation2 + $0x8] sm:$0xff]
    %v127 = vld [vmem:[%s2] sm:$0x1]
    %v129 = vlaneseq
    %v130 = vshrl.u32 %v129, 7
    %v131 = vsub.s32 0, %v130
    %v132 = vrot.slane %v127, %v131
    %v134 = vadd.f32 %v125, %v132
    %v135 = vadd.f32 %v126, %v132
    %v136 = vld [vmem:[%s3] sm:$0xf]
    %v137 = vld [vmem:[%s3 + $0x4] sm:$0xf]
    %v138 = vunpack.c.l.bf16 %v136
    %v139 = vunpack.c.l.bf16 %v137
    %v140 = vadd.f32 %v134, %v138
    %v141 = vadd.f32 %v135, %v139
    %v142 = vsel %vm119, %v140, 0.0
    %143 = vadd.xlane.f32.xlu0 %v142
    %v144 = vpop.xlane.xlu0 %143
    %v145 = vsel %vm119, %v141, 0.0
    %146 = vadd.xlane.f32.xlu0 %v145
    %v147 = vpop.xlane.xlu0 %146
    %v148 = vrcp.pop 32.0
    %v149 = vmul.f32 %v144, %v148
    %v150 = vmul.f32 %v147, %v148
    %v151 = vsub.f32 %v140, %v149
    %v152 = vsub.f32 %v141, %v150
    %v153 = vmul.f32 %v151, %v151
    %v154 = vmul.f32 %v152, %v152
    %v155 = vsel %vm119, %v153, 0.0
    %156 = vadd.xlane.f32.xlu0 %v155
    %v157 = vpop.xlane.xlu0 %156
    %v158 = vsel %vm119, %v154, 0.0
    %159 = vadd.xlane.f32.xlu0 %v158
    %v160 = vpop.xlane.xlu0 %159
    %v161 = vmul.f32 %v157, %v148
    %v162 = vmul.f32 %v160, %v148
    %v163 = vadd.f32 %v161, 1e-12
    %v164 = vadd.f32 %v162, 1e-12
    %v165 = vrsqrt.pop %v163
    %v166 = vrsqrt.pop %v164
    %v167 = vmul.f32 %v151, %v165
    %v168 = vmul.f32 %v152, %v166
    %v169 = vld [vmem:[%s4] sm:$0x1]
    %v171 = vlaneseq
    %v172 = vshrl.u32 %v171, 7
    %v173 = vsub.s32 0, %v172
    %v174 = vrot.slane %v169, %v173
    %v176 = vmul.f32 %v167, %v174
    %v177 = vmul.f32 %v168, %v174
    %v178 = vld [vmem:[%s5] sm:$0x1]
    %v180 = vlaneseq
    %v181 = vshrl.u32 %v180, 7
    %v182 = vsub.s32 0, %v181
    %v183 = vrot.slane %v178, %v182
    %v185 = vadd.f32 %v176, %v183
    %v186 = vadd.f32 %v177, %v183
    %v187 = vpack.c.bf16 %v186, %v185
    %v189 = vunpack.c.l.b16 %v187
    %v190 = vunpack.c.h.b16 %v187
    %v191 = vpack.c.b16 %v189, %v189
    %v192 = vpack.c.b16 %v190, %v190
    %vm195 = vcmask 257024
    %196 = vst.msk [vmem:[%s6] sm:$0xf] %vm195, %v191
    %197 = vst.msk [vmem:[%s6 + $0x4] sm:$0xf] %vm195, %v192
  $region33: #{bert_classifier_forward.14} parent=0 // pred_fallthru
    _
  // Predicated region
  $region34: #{bert_classifier_forward.14} parent=0 // pred_check
    _
  $region35: #{bert_classifier_forward.14} parent=0 // pred_check_branch
    %199 = sbr.rel (0) target = $region37
  $region36: #{bert_classifier_forward.14} parent=0 // pred_region
    _
  $region37: #{bert_classifier_forward.14} parent=0 // pred_fallthru
    _
  // Predicated region
  $region38: #{bert_classifier_forward.14} parent=0 // pred_check
    _
  $region39: #{bert_classifier_forward.14} parent=0 // pred_check_branch
    %201 = sbr.rel (0) target = $region41
  $region40: #{bert_classifier_forward.14} parent=0 // pred_region
    _
  $region41: #{bert_classifier_forward.14} parent=0 // pred_fallthru
    _

</llo_original>
